<compile_context>
chip_gen: v5e
topology: v5e:2x2
jax: 0.10.0
libtpu: 0.0.40
codegen_flags: <defaults>
</compile_context>

<pallas_src>
import functools

import numpy as np
import jax
import jax.numpy as jnp
from jax import lax
from jax.experimental import pallas as pl
from jax.experimental.pallas import tpu as pltpu

EXPANSION = 4
BN_EPS = 1e-3  # the PyTorch module explicitly uses BatchNorm2d(..., eps=0.001)


# ----------------------------- fused Pallas kernel --------------------------

def _bottleneck_kernel(*refs, has_proj):
    """Fused 1x1 -> 3x3 -> 1x1 (BN folded, ReLU) + shortcut add, per image."""
    if has_proj:
        (x_ref, w1_ref, b1_ref, w2_ref, b2_ref, w3_ref, b3_ref,
         ws_ref, bs_ref, o_ref, y1p_ref) = refs
    else:
        (x_ref, w1_ref, b1_ref, w2_ref, b2_ref, w3_ref, b3_ref,
         o_ref, y1p_ref) = refs

    hp, wp, cmid = y1p_ref.shape          # padded scratch: (Ho+2, Wo+2, Cmid)
    ho, wo = hp - 2, wp - 2

    x2d = x_ref[0]                        # (Ho*Wo, Cin) — flattened in wrapper

    # ---- conv1: 1x1 (+BN folded) + ReLU, result kept in padded VMEM scratch ----
    y1 = jnp.dot(x2d, w1_ref[...], preferred_element_type=jnp.float32)
    y1 = jnp.maximum(y1 + b1_ref[...], 0.0)
    y1p_ref[...] = jnp.zeros_like(y1p_ref)             # zero halo == pad=1
    y1p_ref[1:ho + 1, 1:wo + 1, :] = y1.reshape(ho, wo, cmid)

    # ---- conv2: 3x3 pad=1 (+BN folded) + ReLU, one im2col matmul (K=9*Cmid) ----
    y1p = y1p_ref[...]
    cols = []
    for dy in range(3):
        for dx in range(3):
            cols.append(y1p[dy:dy + ho, dx:dx + wo, :].reshape(ho * wo, cmid))
    slab = jnp.concatenate(cols, axis=1)                # (Ho*Wo, 9*Cmid)
    y2 = jnp.dot(slab, w2_ref[...], preferred_element_type=jnp.float32)
    y2 = jnp.maximum(y2 + b2_ref[...], 0.0)

    # ---- conv3: 1x1 (+BN folded) + shortcut + ReLU ----
    main = jnp.dot(y2, w3_ref[...], preferred_element_type=jnp.float32) + b3_ref[...]
    if has_proj:
        short = jnp.dot(x2d, ws_ref[...],
                        preferred_element_type=jnp.float32) + bs_ref[...]
    else:
        short = x2d.astype(jnp.float32)   # identity: Cin == Cout, stride == 1
    o_ref[0] = jnp.maximum(main + short, 0.0).astype(o_ref.dtype)


# ------------------------------ parameters ---------------------------------

def init_bottleneck_params(key, in_planes, planes, stride=1):
    out_planes = EXPANSION * planes
    keys = jax.random.split(key, 8)

    def conv_init(kw, kb, shape_w, fan_in):
        bound = 1.0 / float(np.sqrt(fan_in))
        w = jax.random.uniform(kw, shape_w, jnp.float32, -bound, bound)
        b = jax.random.uniform(kb, (1, shape_w[-1]), jnp.float32, -bound, bound)
        return w, b

    def bn_init(c):
        return dict(gamma=jnp.ones((c,), jnp.float32),
                    beta=jnp.zeros((c,), jnp.float32),
                    mean=jnp.zeros((c,), jnp.float32),
                    var=jnp.ones((c,), jnp.float32))

    w1, b1 = conv_init(keys[0], keys[1], (in_planes, planes), in_planes)
    w2, b2 = conv_init(keys[2], keys[3], (3, 3, planes, planes), planes * 9)
    w3, b3 = conv_init(keys[4], keys[5], (planes, out_planes), planes)
    p = dict(w1=w1, b1=b1, bn1=bn_init(planes),
             w2=w2, b2=b2, bn2=bn_init(planes),
             w3=w3, b3=b3, bn3=bn_init(out_planes),
             has_proj=(stride != 1 or in_planes != out_planes),
             stride=stride)
    if p["has_proj"]:
        ws, bs = conv_init(keys[6], keys[7], (in_planes, out_planes), in_planes)
        p.update(ws=ws, bs=bs, bns=bn_init(out_planes))
    return p


def _fold_bn(w, b, bn):
    scale = bn["gamma"] / jnp.sqrt(bn["var"] + BN_EPS)
    shift = bn["beta"] - bn["mean"] * scale
    return w * scale, b * scale + shift


# ------------------------------- forward -----------------------------------

def bottleneck_forward(x, p):
    """x: NHWC float32. Returns NHWC float32."""
    N, H, W, Cin = x.shape
    stride = p["stride"]
    has_proj = p["has_proj"]

    if stride != 1:
        # TODO(synk): fold the stride into the BlockSpec / pl.ds(..., stride)
        # instead of this wrapper-level gather (only hit on strided blocks).
        x = x[:, ::stride, ::stride, :]
    Ho, Wo = x.shape[1], x.shape[2]

    w1, b1 = _fold_bn(p["w1"], p["b1"], p["bn1"])
    w2, b2 = _fold_bn(p["w2"], p["b2"], p["bn2"])
    w3, b3 = _fold_bn(p["w3"], p["b3"], p["bn3"])
    Cmid = w1.shape[1]
    Cout = w3.shape[1]
    w2r = w2.reshape(9 * Cmid, Cmid)      # (dy, dx, cin) flattened into K

    # Present 1x1-conv data as 2-D (H*W, C) tiles (flatten is free in HBM).
    x_flat = x.reshape(N, Ho * Wo, Cin)

    args = [x_flat, w1, b1, w2r, b2, w3, b3]
    in_specs = [
        pl.BlockSpec((1, Ho * Wo, Cin), lambda n: (n, 0, 0)),
        pl.BlockSpec((Cin, Cmid), lambda n: (0, 0)),
        pl.BlockSpec((1, Cmid), lambda n: (0, 0)),
        pl.BlockSpec((9 * Cmid, Cmid), lambda n: (0, 0)),
        pl.BlockSpec((1, Cmid), lambda n: (0, 0)),
        pl.BlockSpec((Cmid, Cout), lambda n: (0, 0)),
        pl.BlockSpec((1, Cout), lambda n: (0, 0)),
    ]
    flops = 2 * N * Ho * Wo * (Cin * Cmid + 9 * Cmid * Cmid + Cmid * Cout)
    bytes_accessed = 4 * (x_flat.size + N * Ho * Wo * Cout
                          + w1.size + w2r.size + w3.size)
    if has_proj:
        ws, bs = _fold_bn(p["ws"], p["bs"], p["bns"])
        args += [ws, bs]
        in_specs += [pl.BlockSpec((Cin, Cout), lambda n: (0, 0)),
                     pl.BlockSpec((1, Cout), lambda n: (0, 0))]
        flops += 2 * N * Ho * Wo * Cin * Cout
        bytes_accessed += 4 * int(ws.size)

    out = pl.pallas_call(
        functools.partial(_bottleneck_kernel, has_proj=has_proj),
        out_shape=jax.ShapeDtypeStruct((N, Ho * Wo, Cout), x.dtype),
        grid=(N,),
        in_specs=in_specs,
        out_specs=pl.BlockSpec((1, Ho * Wo, Cout), lambda n: (n, 0, 0)),
        scratch_shapes=[pltpu.VMEM((Ho + 2, Wo + 2, Cmid), jnp.float32)],
        compiler_params=pltpu.CompilerParams(
            dimension_semantics=("parallel",)),
        cost_estimate=pl.CostEstimate(flops=int(flops), transcendentals=0,
                                      bytes_accessed=int(bytes_accessed)),
    )(*args)
    return out.reshape(N, Ho, Wo, Cout)


# ------------------------------ pure-JAX ref --------------------------------

def bottleneck_reference(x, p):
    dn = ("NHWC", "HWIO", "NHWC")

    def bn(y, bnp):
        scale = bnp["gamma"] / jnp.sqrt(bnp["var"] + BN_EPS)
        return (y - bnp["mean"]) * scale + bnp["beta"]

    def conv1x1(inp, w, b, stride=1):
        y = lax.conv_general_dilated(inp, w.reshape(1, 1, *w.shape),
                                     (stride, stride), "VALID",
                                     dimension_numbers=dn)
        return y + b.reshape(1, 1, 1, -1)

    stride = p["stride"]
    y = jnp.maximum(bn(conv1x1(x, p["w1"], p["b1"], stride), p["bn1"]), 0.0)
    y = lax.conv_general_dilated(y, p["w2"], (1, 1), "SAME",
                                 dimension_numbers=dn) + p["b2"].reshape(1, 1, 1, -1)
    y = jnp.maximum(bn(y, p["bn2"]), 0.0)
    y = bn(conv1x1(y, p["w3"], p["b3"]), p["bn3"])
    if p["has_proj"]:
        sc = bn(conv1x1(x, p["ws"], p["bs"], stride), p["bns"])
    else:
        sc = x[:, ::stride, ::stride, :]
    return jnp.maximum(y + sc, 0.0)


# --------------------------------- main -------------------------------------

if __name__ == "__main__":
    key = jax.random.PRNGKey(0)
    kx, kp1, kp2 = jax.random.split(key, 3)

    N, H, W = 2, 16, 16

    # Case 1: projection shortcut (in_planes != expansion*planes).
    in_planes, planes, stride = 4, 4, 1
    x_nchw = jax.random.normal(kx, (N, in_planes, H, W), jnp.float32)
    x = jnp.transpose(x_nchw, (0, 2, 3, 1))               # NCHW -> NHWC
    params = init_bottleneck_params(kp1, in_planes, planes, stride)
    out = jax.block_until_ready(bottleneck_forward(x, params))
    ref = bottleneck_reference(x, params)
    assert out.shape == ref.shape == (N, H, W, EXPANSION * planes)
    np.testing.assert_allclose(np.asarray(out), np.asarray(ref),
                               rtol=1e-4, atol=1e-4)

    # Case 2: identity shortcut (in_planes == expansion*planes, stride=1).
    in_planes2, planes2 = 16, 4
    x2_nchw = jax.random.normal(kx, (N, in_planes2, H, W), jnp.float32)
    x2 = jnp.transpose(x2_nchw, (0, 2, 3, 1))
    params2 = init_bottleneck_params(kp2, in_planes2, planes2, 1)
    out2 = jax.block_until_ready(bottleneck_forward(x2, params2))
    ref2 = bottleneck_reference(x2, params2)
    assert out2.shape == ref2.shape == (N, H, W, EXPANSION * planes2)
    np.testing.assert_allclose(np.asarray(out2), np.asarray(ref2),
                               rtol=1e-4, atol=1e-4)

    print("KERNEL_OK")
</pallas_src>

<mosaic_0001>
module attributes {stable_mosaic.version = 11 : i64} {
  func.func @_bottleneck_kernel(%arg0: i32, %arg1: memref<1x256x4xf32, #tpu.memory_space<vmem>>, %arg2: memref<4x4xf32, #tpu.memory_space<vmem>>, %arg3: memref<1x4xf32, #tpu.memory_space<vmem>>, %arg4: memref<36x4xf32, #tpu.memory_space<vmem>>, %arg5: memref<1x4xf32, #tpu.memory_space<vmem>>, %arg6: memref<4x16xf32, #tpu.memory_space<vmem>>, %arg7: memref<1x16xf32, #tpu.memory_space<vmem>>, %arg8: memref<4x16xf32, #tpu.memory_space<vmem>>, %arg9: memref<1x16xf32, #tpu.memory_space<vmem>>, %arg10: memref<1x256x16xf32, #tpu.memory_space<vmem>>, %arg11: memref<18x18x4xf32, #tpu.memory_space<vmem>>) attributes {dimension_semantics = [#tpu.dimension_semantics<parallel>], iteration_bounds = array<i64: 2>, scalar_prefetch = 0 : i64, scratch_operands = 1 : i64, tpu.core_type = #tpu.core_type<tc>, window_params = [{transform_indices = @transform_0, window_bounds = array<i64: 1, 256, 4>}, {pipeline_mode = #tpu.pipeline_mode<synchronous>, transform_indices = @transform_1, window_bounds = array<i64: 4, 4>}, {pipeline_mode = #tpu.pipeline_mode<synchronous>, transform_indices = @transform_2, window_bounds = array<i64: 1, 4>}, {pipeline_mode = #tpu.pipeline_mode<synchronous>, transform_indices = @transform_3, window_bounds = array<i64: 36, 4>}, {pipeline_mode = #tpu.pipeline_mode<synchronous>, transform_indices = @transform_4, window_bounds = array<i64: 1, 4>}, {pipeline_mode = #tpu.pipeline_mode<synchronous>, transform_indices = @transform_5, window_bounds = array<i64: 4, 16>}, {pipeline_mode = #tpu.pipeline_mode<synchronous>, transform_indices = @transform_6, window_bounds = array<i64: 1, 16>}, {pipeline_mode = #tpu.pipeline_mode<synchronous>, transform_indices = @transform_7, window_bounds = array<i64: 4, 16>}, {pipeline_mode = #tpu.pipeline_mode<synchronous>, transform_indices = @transform_8, window_bounds = array<i64: 1, 16>}, {transform_indices = @transform_9, window_bounds = array<i64: 1, 256, 16>}]} {
    %c0 = arith.constant 0 : index
    %c0_0 = arith.constant 0 : index
    %c0_1 = arith.constant 0 : index
    %0 = vector.load %arg1[%c0, %c0_0, %c0_1] : memref<1x256x4xf32, #tpu.memory_space<vmem>>, vector<1x256x4xf32>
    %1 = vector.shape_cast %0 : vector<1x256x4xf32> to vector<256x4xf32>
    %c0_2 = arith.constant 0 : index
    %c0_3 = arith.constant 0 : index
    %2 = vector.load %arg2[%c0_2, %c0_3] : memref<4x4xf32, #tpu.memory_space<vmem>>, vector<4x4xf32>
    %cst = arith.constant dense<0.000000e+00> : vector<256x4xf32>
    %3 = tpu.matmul %1, %2, %cst {dimension_numbers = #tpu.dot_dimension_numbers<[1], [0], [0], [1], [0, 0, 1, 1], [], []>} : vector<256x4xf32>, vector<4x4xf32>, vector<256x4xf32> -> vector<256x4xf32>
    %c0_4 = arith.constant 0 : index
    %c0_5 = arith.constant 0 : index
    %4 = vector.load %arg3[%c0_4, %c0_5] : memref<1x4xf32, #tpu.memory_space<vmem>>, vector<1x4xf32>
    %5 = vector.broadcast %4 : vector<1x4xf32> to vector<256x4xf32>
    %6 = arith.addf %3, %5 : vector<256x4xf32>
    %cst_6 = arith.constant 0.000000e+00 : f32
    %7 = vector.broadcast %cst_6 : f32 to vector<256x4xf32>
    %8 = arith.maximumf %6, %7 : vector<256x4xf32>
    %cst_7 = arith.constant 0.000000e+00 : f32
    %9 = vector.broadcast %cst_7 : f32 to vector<18x18x4xf32>
    %c0_8 = arith.constant 0 : index
    %c0_9 = arith.constant 0 : index
    %c0_10 = arith.constant 0 : index
    %10 = vector.load %arg11[%c0_8, %c0_9, %c0_10] : memref<18x18x4xf32, #tpu.memory_space<vmem>>, vector<18x18x4xf32>
    tpu.vector_store %arg11[%c0_8, %c0_9, %c0_10], %9 {strides = array<i32>} : memref<18x18x4xf32, #tpu.memory_space<vmem>>, vector<18x18x4xf32>,
    %11 = vector.shape_cast %8 : vector<256x4xf32> to vector<16x16x4xf32>
    %c1 = arith.constant 1 : index
    %c1_11 = arith.constant 1 : index
    %c0_12 = arith.constant 0 : index
    %12 = vector.load %arg11[%c1, %c1_11, %c0_12] : memref<18x18x4xf32, #tpu.memory_space<vmem>>, vector<16x16x4xf32>
    tpu.vector_store %arg11[%c1, %c1_11, %c0_12], %11 {strides = array<i32>} : memref<18x18x4xf32, #tpu.memory_space<vmem>>, vector<16x16x4xf32>,
    %c0_13 = arith.constant 0 : index
    %c0_14 = arith.constant 0 : index
    %c0_15 = arith.constant 0 : index
    %13 = vector.load %arg11[%c0_13, %c0_14, %c0_15] : memref<18x18x4xf32, #tpu.memory_space<vmem>>, vector<18x18x4xf32>
    %14 = vector.extract_strided_slice %13 {offsets = [0, 0, 0], sizes = [16, 16, 4], strides = [1, 1, 1]} : vector<18x18x4xf32> to vector<16x16x4xf32>
    %15 = vector.shape_cast %14 : vector<16x16x4xf32> to vector<256x4xf32>
    %16 = vector.extract_strided_slice %13 {offsets = [0, 1, 0], sizes = [16, 16, 4], strides = [1, 1, 1]} : vector<18x18x4xf32> to vector<16x16x4xf32>
    %17 = vector.shape_cast %16 : vector<16x16x4xf32> to vector<256x4xf32>
    %18 = vector.extract_strided_slice %13 {offsets = [0, 2, 0], sizes = [16, 16, 4], strides = [1, 1, 1]} : vector<18x18x4xf32> to vector<16x16x4xf32>
    %19 = vector.shape_cast %18 : vector<16x16x4xf32> to vector<256x4xf32>
    %20 = vector.extract_strided_slice %13 {offsets = [1, 0, 0], sizes = [16, 16, 4], strides = [1, 1, 1]} : vector<18x18x4xf32> to vector<16x16x4xf32>
    %21 = vector.shape_cast %20 : vector<16x16x4xf32> to vector<256x4xf32>
    %22 = vector.extract_strided_slice %13 {offsets = [1, 1, 0], sizes = [16, 16, 4], strides = [1, 1, 1]} : vector<18x18x4xf32> to vector<16x16x4xf32>
    %23 = vector.shape_cast %22 : vector<16x16x4xf32> to vector<256x4xf32>
    %24 = vector.extract_strided_slice %13 {offsets = [1, 2, 0], sizes = [16, 16, 4], strides = [1, 1, 1]} : vector<18x18x4xf32> to vector<16x16x4xf32>
    %25 = vector.shape_cast %24 : vector<16x16x4xf32> to vector<256x4xf32>
    %26 = vector.extract_strided_slice %13 {offsets = [2, 0, 0], sizes = [16, 16, 4], strides = [1, 1, 1]} : vector<18x18x4xf32> to vector<16x16x4xf32>
    %27 = vector.shape_cast %26 : vector<16x16x4xf32> to vector<256x4xf32>
    %28 = vector.extract_strided_slice %13 {offsets = [2, 1, 0], sizes = [16, 16, 4], strides = [1, 1, 1]} : vector<18x18x4xf32> to vector<16x16x4xf32>
    %29 = vector.shape_cast %28 : vector<16x16x4xf32> to vector<256x4xf32>
    %30 = vector.extract_strided_slice %13 {offsets = [2, 2, 0], sizes = [16, 16, 4], strides = [1, 1, 1]} : vector<18x18x4xf32> to vector<16x16x4xf32>
    %31 = vector.shape_cast %30 : vector<16x16x4xf32> to vector<256x4xf32>
    %32 = tpu.concatenate %15, %17, %19, %21, %23, %25, %27, %29, %31 in 1 : vector<256x4xf32>, vector<256x4xf32>, vector<256x4xf32>, vector<256x4xf32>, vector<256x4xf32>, vector<256x4xf32>, vector<256x4xf32>, vector<256x4xf32>, vector<256x4xf32> -> vector<256x36xf32>
    %c0_16 = arith.constant 0 : index
    %c0_17 = arith.constant 0 : index
    %33 = vector.load %arg4[%c0_16, %c0_17] : memref<36x4xf32, #tpu.memory_space<vmem>>, vector<36x4xf32>
    %cst_18 = arith.constant dense<0.000000e+00> : vector<256x4xf32>
    %34 = tpu.matmul %32, %33, %cst_18 {dimension_numbers = #tpu.dot_dimension_numbers<[1], [0], [0], [1], [0, 0, 1, 1], [], []>} : vector<256x36xf32>, vector<36x4xf32>, vector<256x4xf32> -> vector<256x4xf32>
    %c0_19 = arith.constant 0 : index
    %c0_20 = arith.constant 0 : index
    %35 = vector.load %arg5[%c0_19, %c0_20] : memref<1x4xf32, #tpu.memory_space<vmem>>, vector<1x4xf32>
    %36 = vector.broadcast %35 : vector<1x4xf32> to vector<256x4xf32>
    %37 = arith.addf %34, %36 : vector<256x4xf32>
    %cst_21 = arith.constant 0.000000e+00 : f32
    %38 = vector.broadcast %cst_21 : f32 to vector<256x4xf32>
    %39 = arith.maximumf %37, %38 : vector<256x4xf32>
    %c0_22 = arith.constant 0 : index
    %c0_23 = arith.constant 0 : index
    %40 = vector.load %arg6[%c0_22, %c0_23] : memref<4x16xf32, #tpu.memory_space<vmem>>, vector<4x16xf32>
    %cst_24 = arith.constant dense<0.000000e+00> : vector<256x16xf32>
    %41 = tpu.matmul %39, %40, %cst_24 {dimension_numbers = #tpu.dot_dimension_numbers<[1], [0], [0], [1], [0, 0, 1, 1], [], []>} : vector<256x4xf32>, vector<4x16xf32>, vector<256x16xf32> -> vector<256x16xf32>
    %c0_25 = arith.constant 0 : index
    %c0_26 = arith.constant 0 : index
    %42 = vector.load %arg7[%c0_25, %c0_26] : memref<1x16xf32, #tpu.memory_space<vmem>>, vector<1x16xf32>
    %43 = vector.broadcast %42 : vector<1x16xf32> to vector<256x16xf32>
    %44 = arith.addf %41, %43 : vector<256x16xf32>
    %c0_27 = arith.constant 0 : index
    %c0_28 = arith.constant 0 : index
    %45 = vector.load %arg8[%c0_27, %c0_28] : memref<4x16xf32, #tpu.memory_space<vmem>>, vector<4x16xf32>
    %cst_29 = arith.constant dense<0.000000e+00> : vector<256x16xf32>
    %46 = tpu.matmul %1, %45, %cst_29 {dimension_numbers = #tpu.dot_dimension_numbers<[1], [0], [0], [1], [0, 0, 1, 1], [], []>} : vector<256x4xf32>, vector<4x16xf32>, vector<256x16xf32> -> vector<256x16xf32>
    %c0_30 = arith.constant 0 : index
    %c0_31 = arith.constant 0 : index
    %47 = vector.load %arg9[%c0_30, %c0_31] : memref<1x16xf32, #tpu.memory_space<vmem>>, vector<1x16xf32>
    %48 = vector.broadcast %47 : vector<1x16xf32> to vector<256x16xf32>
    %49 = arith.addf %46, %48 : vector<256x16xf32>
    %50 = arith.addf %44, %49 : vector<256x16xf32>
    %cst_32 = arith.constant 0.000000e+00 : f32
    %51 = vector.broadcast %cst_32 : f32 to vector<256x16xf32>
    %52 = arith.maximumf %50, %51 : vector<256x16xf32>
    %c0_33 = arith.constant 0 : index
    %c0_34 = arith.constant 0 : index
    %c0_35 = arith.constant 0 : index
    %53 = vector.load %arg10[%c0_33, %c0_34, %c0_35] : memref<1x256x16xf32, #tpu.memory_space<vmem>>, vector<1x256x16xf32>
    %54 = vector.shape_cast %53 : vector<1x256x16xf32> to vector<256x16xf32>
    %55 = vector.shape_cast %52 : vector<256x16xf32> to vector<1x256x16xf32>
    tpu.vector_store %arg10[%c0_33, %c0_34, %c0_35], %55 {strides = array<i32>} : memref<1x256x16xf32, #tpu.memory_space<vmem>>, vector<1x256x16xf32>,
    return
  }
  func.func @transform_0(%arg0: i32) -> (i32, i32, i32) {
    %c0_i32 = arith.constant 0 : i32
    %c0_i32_0 = arith.constant 0 : i32
    %c0_i32_1 = arith.constant 0 : i32
    return %arg0, %c0_i32, %c0_i32_0 : i32, i32, i32
  }
  func.func @transform_1(%arg0: i32) -> (i32, i32) {
    %c0_i32 = arith.constant 0 : i32
    %c0_i32_0 = arith.constant 0 : i32
    %c0_i32_1 = arith.constant 0 : i32
    return %c0_i32, %c0_i32_0 : i32, i32
  }
  func.func @transform_2(%arg0: i32) -> (i32, i32) {
    %c0_i32 = arith.constant 0 : i32
    %c0_i32_0 = arith.constant 0 : i32
    %c0_i32_1 = arith.constant 0 : i32
    return %c0_i32, %c0_i32_0 : i32, i32
  }
  func.func @transform_3(%arg0: i32) -> (i32, i32) {
    %c0_i32 = arith.constant 0 : i32
    %c0_i32_0 = arith.constant 0 : i32
    %c0_i32_1 = arith.constant 0 : i32
    return %c0_i32, %c0_i32_0 : i32, i32
  }
  func.func @transform_4(%arg0: i32) -> (i32, i32) {
    %c0_i32 = arith.constant 0 : i32
    %c0_i32_0 = arith.constant 0 : i32
    %c0_i32_1 = arith.constant 0 : i32
    return %c0_i32, %c0_i32_0 : i32, i32
  }
  func.func @transform_5(%arg0: i32) -> (i32, i32) {
    %c0_i32 = arith.constant 0 : i32
    %c0_i32_0 = arith.constant 0 : i32
    %c0_i32_1 = arith.constant 0 : i32
    return %c0_i32, %c0_i32_0 : i32, i32
  }
  func.func @transform_6(%arg0: i32) -> (i32, i32) {
    %c0_i32 = arith.constant 0 : i32
    %c0_i32_0 = arith.constant 0 : i32
    %c0_i32_1 = arith.constant 0 : i32
    return %c0_i32, %c0_i32_0 : i32, i32
  }
  func.func @transform_7(%arg0: i32) -> (i32, i32) {
    %c0_i32 = arith.constant 0 : i32
    %c0_i32_0 = arith.constant 0 : i32
    %c0_i32_1 = arith.constant 0 : i32
    return %c0_i32, %c0_i32_0 : i32, i32
  }
  func.func @transform_8(%arg0: i32) -> (i32, i32) {
    %c0_i32 = arith.constant 0 : i32
    %c0_i32_0 = arith.constant 0 : i32
    %c0_i32_1 = arith.constant 0 : i32
    return %c0_i32, %c0_i32_0 : i32, i32
  }
  func.func @transform_9(%arg0: i32) -> (i32, i32, i32) {
    %c0_i32 = arith.constant 0 : i32
    %c0_i32_0 = arith.constant 0 : i32
    %c0_i32_1 = arith.constant 0 : i32
    return %arg0, %c0_i32, %c0_i32_0 : i32, i32, i32
  }
}

</mosaic_0001>

<llo_original>
// kernel: tpu_custom_call.1
$region0: #{tpu_custom_call.1}
  #allocation0 [shape = 'u32[]', space=smem, size = 0x4, offset = 0x4, fixed_abs, tag = 'smem constant byte address 0x4 - core index']
  #allocation1 [shape = 'u32[72,128]{1,0:T(1,128)}', space=vmem, size = 0x9000, scoped, tag = 'internal scratch']
  #allocation2 [shape = 'f32[18,18,4]{2,1,0:T(8,128)}', space=vmem, size = 0x36000, scoped, tag = 'scratch operand']
  %s0 = inlined_call_operand.vmem [shape: f32[2,256,4], index: 0, kind: input, shape index: {}]
  %s1 = inlined_call_operand.vmem [shape: f32[4,4], index: 1, kind: input, shape index: {}]
  %s2 = inlined_call_operand.vmem [shape: f32[1,4], index: 2, kind: input, shape index: {}]
  %s3 = inlined_call_operand.vmem [shape: f32[36,4], index: 3, kind: input, shape index: {}]
  %s4 = inlined_call_operand.vmem [shape: f32[1,4], index: 4, kind: input, shape index: {}]
  %s5 = inlined_call_operand.vmem [shape: f32[4,16], index: 5, kind: input, shape index: {}]
  %s6 = inlined_call_operand.vmem [shape: f32[1,16], index: 6, kind: input, shape index: {}]
  %s7 = inlined_call_operand.vmem [shape: f32[4,16], index: 7, kind: input, shape index: {}]
  %s8 = inlined_call_operand.vmem [shape: f32[1,16], index: 8, kind: input, shape index: {}]
  %s9 = inlined_call_operand.vmem [shape: f32[2,256,16], index: 9, kind: output, shape index: {}]
  %s10 = sld [smem:[#allocation0]]
  $region69: #{tpu_custom_call.1} parent=0
    _
  %s12 = ssub.s32 1, %s10
  %s13 = scalar_select 0, %s12, %s10
  loop: start=0, step=1, limit=4
  $region2: #{tpu_custom_call.1} parent=0 // loop_pre_header
    _
  $region3: #{tpu_custom_call.1} parent=0 // loop_header
    %s15 = sphi 0, %s19
    %p16 = scmp.ge.s32.totalorder %s15, 4
    %s25 = sphi 0, %s27
    %s28 = sphi 0, %s25
    %s29 = sphi 0, %s28
    %s45 = sphi 0, %s29
    %s49 = sphi 0, %s49
    %s51 = sphi 0, %s49
    %s52 = sphi 0, %s51
    %s66 = sphi 0, %s52
    %s70 = sphi 0, %s70
    %s72 = sphi 0, %s70
    %s73 = sphi 0, %s72
    %s87 = sphi 0, %s73
    %s91 = sphi 0, %s91
    %s93 = sphi 0, %s91
    %s94 = sphi 0, %s93
    %s108 = sphi 0, %s94
    %s112 = sphi 0, %s112
    %s114 = sphi 0, %s112
    %s115 = sphi 0, %s114
    %s129 = sphi 0, %s115
    %s133 = sphi 0, %s133
    %s135 = sphi 0, %s133
    %s136 = sphi 0, %s135
    %s150 = sphi 0, %s136
    %s154 = sphi 0, %s154
    %s156 = sphi 0, %s154
    %s157 = sphi 0, %s156
    %s171 = sphi 0, %s157
    %s175 = sphi 0, %s175
    %s177 = sphi 0, %s175
    %s178 = sphi 0, %s177
    %s192 = sphi 0, %s178
    %s196 = sphi 0, %s196
    %s198 = sphi 0, %s196
    %s199 = sphi 0, %s198
    %s213 = sphi 0, %s199
    %s219 = sphi 0, %s221
    %s222 = sphi 0, %s219
    %s223 = sphi 0, %s222
    %s239 = sphi 0, %s223
  $region4: #{tpu_custom_call.1} parent=0 // loop_header_branch
    %18 = sbr.rel (%p16) target = $region8
  $region5: #{tpu_custom_call.1} parent=0 // loop_body
    %s20 = ssub.s32 %s15, 1
    %s21 = ssub.s32 %s15, 2
    %s22 = sadd.s32 %s15, 1
    %s23 = ssub.s32 %s15, %s22
    %p24 = scmp.eq.s32.totalorder %s23, 0
    %s26 = sadd.s32 %s25, 1
    %s27 = scalar_select %p24, %s25, %s26
    %p30 = pneg %p24
    %p31 = scmp.eq.s32.totalorder %s15, 1
    %p32 = por %p30, %p31
    %p33 = scmp.ne.s32.totalorder %s25, %s28
    %p34 = scmp.eq.s32.totalorder %s15, 0
    %p35 = por %p33, %p34
    %p36 = scmp.ne.s32.totalorder %s25, %s28
    %p37 = scmp.eq.s32.totalorder %s20, 1
    %p38 = por %p36, %p37
    %p39 = scmp.ne.s32.totalorder %s28, %s29
    %p40 = scmp.eq.s32.totalorder %s20, 0
    %p41 = por %p39, %p40
    %p42 = scmp.ne.s32.totalorder %s28, %s29
    %p43 = scmp.eq.s32.totalorder %s21, 1
    %p44 = por %p42, %p43
    %p46 = scmp.ne.s32.totalorder %s29, %s45
    %p47 = scmp.eq.s32.totalorder %s21, 0
    %p48 = por %p46, %p47
    %s50 = sadd.s32 %s49, 1
    %p53 = scmp.eq.s32.totalorder %s15, 1
    %p54 = scmp.ne.s32.totalorder %s49, %s51
    %p55 = scmp.eq.s32.totalorder %s15, 0
    %p56 = por %p54, %p55
    %p57 = scmp.ne.s32.totalorder %s49, %s51
    %p58 = scmp.eq.s32.totalorder %s20, 1
    %p59 = por %p57, %p58
    %p60 = scmp.ne.s32.totalorder %s51, %s52
    %p61 = scmp.eq.s32.totalorder %s20, 0
    %p62 = por %p60, %p61
    %p63 = scmp.ne.s32.totalorder %s51, %s52
    %p64 = scmp.eq.s32.totalorder %s21, 1
    %p65 = por %p63, %p64
    %p67 = scmp.ne.s32.totalorder %s52, %s66
    %p68 = scmp.eq.s32.totalorder %s21, 0
    %p69 = por %p67, %p68
    %s71 = sadd.s32 %s70, 1
    %p74 = scmp.eq.s32.totalorder %s15, 1
    %p75 = scmp.ne.s32.totalorder %s70, %s72
    %p76 = scmp.eq.s32.totalorder %s15, 0
    %p77 = por %p75, %p76
    %p78 = scmp.ne.s32.totalorder %s70, %s72
    %p79 = scmp.eq.s32.totalorder %s20, 1
    %p80 = por %p78, %p79
    %p81 = scmp.ne.s32.totalorder %s72, %s73
    %p82 = scmp.eq.s32.totalorder %s20, 0
    %p83 = por %p81, %p82
    %p84 = scmp.ne.s32.totalorder %s72, %s73
    %p85 = scmp.eq.s32.totalorder %s21, 1
    %p86 = por %p84, %p85
    %p88 = scmp.ne.s32.totalorder %s73, %s87
    %p89 = scmp.eq.s32.totalorder %s21, 0
    %p90 = por %p88, %p89
    %s92 = sadd.s32 %s91, 1
    %p95 = scmp.eq.s32.totalorder %s15, 1
    %p96 = scmp.ne.s32.totalorder %s91, %s93
    %p97 = scmp.eq.s32.totalorder %s15, 0
    %p98 = por %p96, %p97
    %p99 = scmp.ne.s32.totalorder %s91, %s93
    %p100 = scmp.eq.s32.totalorder %s20, 1
    %p101 = por %p99, %p100
    %p102 = scmp.ne.s32.totalorder %s93, %s94
    %p103 = scmp.eq.s32.totalorder %s20, 0
    %p104 = por %p102, %p103
    %p105 = scmp.ne.s32.totalorder %s93, %s94
    %p106 = scmp.eq.s32.totalorder %s21, 1
    %p107 = por %p105, %p106
    %p109 = scmp.ne.s32.totalorder %s94, %s108
    %p110 = scmp.eq.s32.totalorder %s21, 0
    %p111 = por %p109, %p110
    %s113 = sadd.s32 %s112, 1
    %p116 = scmp.eq.s32.totalorder %s15, 1
    %p117 = scmp.ne.s32.totalorder %s112, %s114
    %p118 = scmp.eq.s32.totalorder %s15, 0
    %p119 = por %p117, %p118
    %p120 = scmp.ne.s32.totalorder %s112, %s114
    %p121 = scmp.eq.s32.totalorder %s20, 1
    %p122 = por %p120, %p121
    %p123 = scmp.ne.s32.totalorder %s114, %s115
    %p124 = scmp.eq.s32.totalorder %s20, 0
    %p125 = por %p123, %p124
    %p126 = scmp.ne.s32.totalorder %s114, %s115
    %p127 = scmp.eq.s32.totalorder %s21, 1
    %p128 = por %p126, %p127
    %p130 = scmp.ne.s32.totalorder %s115, %s129
    %p131 = scmp.eq.s32.totalorder %s21, 0
    %p132 = por %p130, %p131
    %s134 = sadd.s32 %s133, 1
    %p137 = scmp.eq.s32.totalorder %s15, 1
    %p138 = scmp.ne.s32.totalorder %s133, %s135
    %p139 = scmp.eq.s32.totalorder %s15, 0
    %p140 = por %p138, %p139
    %p141 = scmp.ne.s32.totalorder %s133, %s135
    %p142 = scmp.eq.s32.totalorder %s20, 1
    %p143 = por %p141, %p142
    %p144 = scmp.ne.s32.totalorder %s135, %s136
    %p145 = scmp.eq.s32.totalorder %s20, 0
    %p146 = por %p144, %p145
    %p147 = scmp.ne.s32.totalorder %s135, %s136
    %p148 = scmp.eq.s32.totalorder %s21, 1
    %p149 = por %p147, %p148
    %p151 = scmp.ne.s32.totalorder %s136, %s150
    %p152 = scmp.eq.s32.totalorder %s21, 0
    %p153 = por %p151, %p152
    %s155 = sadd.s32 %s154, 1
    %p158 = scmp.eq.s32.totalorder %s15, 1
    %p159 = scmp.ne.s32.totalorder %s154, %s156
    %p160 = scmp.eq.s32.totalorder %s15, 0
    %p161 = por %p159, %p160
    %p162 = scmp.ne.s32.totalorder %s154, %s156
    %p163 = scmp.eq.s32.totalorder %s20, 1
    %p164 = por %p162, %p163
    %p165 = scmp.ne.s32.totalorder %s156, %s157
    %p166 = scmp.eq.s32.totalorder %s20, 0
    %p167 = por %p165, %p166
    %p168 = scmp.ne.s32.totalorder %s156, %s157
    %p169 = scmp.eq.s32.totalorder %s21, 1
    %p170 = por %p168, %p169
    %p172 = scmp.ne.s32.totalorder %s157, %s171
    %p173 = scmp.eq.s32.totalorder %s21, 0
    %p174 = por %p172, %p173
    %s176 = sadd.s32 %s175, 1
    %p179 = scmp.eq.s32.totalorder %s15, 1
    %p180 = scmp.ne.s32.totalorder %s175, %s177
    %p181 = scmp.eq.s32.totalorder %s15, 0
    %p182 = por %p180, %p181
    %p183 = scmp.ne.s32.totalorder %s175, %s177
    %p184 = scmp.eq.s32.totalorder %s20, 1
    %p185 = por %p183, %p184
    %p186 = scmp.ne.s32.totalorder %s177, %s178
    %p187 = scmp.eq.s32.totalorder %s20, 0
    %p188 = por %p186, %p187
    %p189 = scmp.ne.s32.totalorder %s177, %s178
    %p190 = scmp.eq.s32.totalorder %s21, 1
    %p191 = por %p189, %p190
    %p193 = scmp.ne.s32.totalorder %s178, %s192
    %p194 = scmp.eq.s32.totalorder %s21, 0
    %p195 = por %p193, %p194
    %s197 = sadd.s32 %s196, 1
    %p200 = scmp.eq.s32.totalorder %s15, 1
    %p201 = scmp.ne.s32.totalorder %s196, %s198
    %p202 = scmp.eq.s32.totalorder %s15, 0
    %p203 = por %p201, %p202
    %p204 = scmp.ne.s32.totalorder %s196, %s198
    %p205 = scmp.eq.s32.totalorder %s20, 1
    %p206 = por %p204, %p205
    %p207 = scmp.ne.s32.totalorder %s198, %s199
    %p208 = scmp.eq.s32.totalorder %s20, 0
    %p209 = por %p207, %p208
    %p210 = scmp.ne.s32.totalorder %s198, %s199
    %p211 = scmp.eq.s32.totalorder %s21, 1
    %p212 = por %p210, %p211
    %p214 = scmp.ne.s32.totalorder %s199, %s213
    %p215 = scmp.eq.s32.totalorder %s21, 0
    %p216 = por %p214, %p215
    %s217 = ssub.s32 %s15, %s22
    %p218 = scmp.eq.s32.totalorder %s217, 0
    %s220 = sadd.s32 %s219, 1
    %s221 = scalar_select %p218, %s219, %s220
    %p224 = pneg %p218
    %p225 = scmp.eq.s32.totalorder %s15, 1
    %p226 = por %p224, %p225
    %p227 = scmp.ne.s32.totalorder %s219, %s222
    %p228 = scmp.eq.s32.totalorder %s15, 0
    %p229 = por %p227, %p228
    %p230 = scmp.ne.s32.totalorder %s219, %s222
    %p231 = scmp.eq.s32.totalorder %s20, 1
    %p232 = por %p230, %p231
    %p233 = scmp.ne.s32.totalorder %s222, %s223
    %p234 = scmp.eq.s32.totalorder %s20, 0
    %p235 = por %p233, %p234
    %p236 = scmp.ne.s32.totalorder %s222, %s223
    %p237 = scmp.eq.s32.totalorder %s21, 1
    %p238 = por %p236, %p237
    %p240 = scmp.ne.s32.totalorder %s223, %s239
    %p241 = scmp.eq.s32.totalorder %s21, 0
    %p242 = por %p240, %p241
    %p243 = scmp.le.s32.totalorder 1, %s15
    %p244 = scmp.lt.s32.totalorder %s15, 3
    %p245 = pnand %p243, %p244
    %p246 = pneg %p245
    // Predicated region
    $region9: #{tpu_custom_call.1} parent=5 // pred_check
      _
    $region10: #{tpu_custom_call.1} parent=5 // pred_check_branch
      %248 = sbr.rel (%p245) target = $region12
    $region11: #{tpu_custom_call.1} parent=5 // pred_region
      %s249 = ssub.s32 %s15, 1
      // Predicated region
      $region13: #{tpu_custom_call.1} parent=11 // pred_check
        %p250 = pneg %p62
      $region14: #{tpu_custom_call.1} parent=11 // pred_check_branch
        %252 = sbr.rel (%p250) target = $region16
      $region15: #{tpu_custom_call.1} parent=11 // pred_region
        _
      $region16: #{tpu_custom_call.1} parent=11 // pred_fallthru
        _
      // Predicated region
      $region17: #{tpu_custom_call.1} parent=11 // pred_check
        %p253 = pneg %p83
      $region18: #{tpu_custom_call.1} parent=11 // pred_check_branch
        %255 = sbr.rel (%p253) target = $region20
      $region19: #{tpu_custom_call.1} parent=11 // pred_region
        _
      $region20: #{tpu_custom_call.1} parent=11 // pred_fallthru
        _
      // Predicated region
      $region21: #{tpu_custom_call.1} parent=11 // pred_check
        %p256 = pneg %p104
      $region22: #{tpu_custom_call.1} parent=11 // pred_check_branch
        %258 = sbr.rel (%p256) target = $region24
      $region23: #{tpu_custom_call.1} parent=11 // pred_region
        _
      $region24: #{tpu_custom_call.1} parent=11 // pred_fallthru
        _
      // Predicated region
      $region25: #{tpu_custom_call.1} parent=11 // pred_check
        %p259 = pneg %p125
      $region26: #{tpu_custom_call.1} parent=11 // pred_check_branch
        %261 = sbr.rel (%p259) target = $region28
      $region27: #{tpu_custom_call.1} parent=11 // pred_region
        _
      $region28: #{tpu_custom_call.1} parent=11 // pred_fallthru
        _
      // Predicated region
      $region29: #{tpu_custom_call.1} parent=11 // pred_check
        %p262 = pneg %p146
      $region30: #{tpu_custom_call.1} parent=11 // pred_check_branch
        %264 = sbr.rel (%p262) target = $region32
      $region31: #{tpu_custom_call.1} parent=11 // pred_region
        _
      $region32: #{tpu_custom_call.1} parent=11 // pred_fallthru
        _
      // Predicated region
      $region33: #{tpu_custom_call.1} parent=11 // pred_check
        %p265 = pneg %p167
      $region34: #{tpu_custom_call.1} parent=11 // pred_check_branch
        %267 = sbr.rel (%p265) target = $region36
      $region35: #{tpu_custom_call.1} parent=11 // pred_region
        _
      $region36: #{tpu_custom_call.1} parent=11 // pred_fallthru
        _
      // Predicated region
      $region37: #{tpu_custom_call.1} parent=11 // pred_check
        %p268 = pneg %p188
      $region38: #{tpu_custom_call.1} parent=11 // pred_check_branch
        %270 = sbr.rel (%p268) target = $region40
      $region39: #{tpu_custom_call.1} parent=11 // pred_region
        _
      $region40: #{tpu_custom_call.1} parent=11 // pred_fallthru
        _
      // Predicated region
      $region41: #{tpu_custom_call.1} parent=11 // pred_check
        %p271 = pneg %p209
      $region42: #{tpu_custom_call.1} parent=11 // pred_check_branch
        %273 = sbr.rel (%p271) target = $region44
      $region43: #{tpu_custom_call.1} parent=11 // pred_region
        _
      $region44: #{tpu_custom_call.1} parent=11 // pred_fallthru
        _
    $region12: #{tpu_custom_call.1} parent=5 // pred_fallthru
      _
    %p274 = scmp.lt.s32.totalorder %s15, 2
    // Predicated region
    $region45: #{tpu_custom_call.1} parent=5 // pred_check
      %p275 = pneg %p274
    $region46: #{tpu_custom_call.1} parent=5 // pred_check_branch
      %277 = sbr.rel (%p275) target = $region48
    $region47: #{tpu_custom_call.1} parent=5 // pred_region
      // Predicated region
      $region49: #{tpu_custom_call.1} parent=47 // pred_check
        %p278 = pneg %p35
      $region50: #{tpu_custom_call.1} parent=47 // pred_check_branch
        %280 = sbr.rel (%p278) target = $region52
      $region51: #{tpu_custom_call.1} parent=47 // pred_region
        %p281 = scmp.lt.s32.totalorder %s15, 1
        %s282 = scalar_select %p281, %s15, 1
        %s283 = smul.addr %s282, 32
        %s284 = smul.addr %s283, 8
        %s285 = scalar_lea.vmem %s0, %s284
      $region52: #{tpu_custom_call.1} parent=47 // pred_fallthru
        _
    $region48: #{tpu_custom_call.1} parent=5 // pred_fallthru
      _
    %p286 = scmp.le.s32.totalorder 1, %s15
    %p287 = scmp.lt.s32.totalorder %s15, 3
    %p288 = pnand %p286, %p287
    %p289 = pneg %p288
    // Predicated region
    $region53: #{tpu_custom_call.1} parent=5 // pred_check
      _
    $region54: #{tpu_custom_call.1} parent=5 // pred_check_branch
      %291 = sbr.rel (%p288) target = $region56
    $region55: #{tpu_custom_call.1} parent=5 // pred_region
      %s292 = ssub.s32 %s15, 1
      %p293 = scmp.lt.s32.totalorder %s20, 1
      %s294 = scalar_select %p293, %s20, 1
      %s295 = smul.addr %s294, 32
      %s296 = smul.addr %s295, 8
      %s297 = scalar_lea.vmem %s0, %s296
      %p298 = pneg %p41
      %p299 = pneg %p38
      %p300 = pneg %p62
      %p301 = pneg %p59
      %p302 = pneg %p83
      %p303 = pneg %p80
      %p304 = pneg %p104
      %p305 = pneg %p101
      %p306 = pneg %p125
      %p307 = pneg %p122
      %p308 = pneg %p146
      %p309 = pneg %p143
      %p310 = pneg %p167
      %p311 = pneg %p164
      %p312 = pneg %p188
      %p313 = pneg %p185
      %p314 = pneg %p209
      %p315 = pneg %p206
      %p316 = pneg %p235
      %p317 = pneg %p232
      %p318 = scmp.lt.s32.totalorder %s20, 1
      %s319 = scalar_select %p318, %s20, 1
      %s320 = smul.addr %s319, 32
      %s321 = smul.addr %s320, 8
      %s322 = scalar_lea.vmem %s9, %s321
      %p323 = scmp.lt.s32.totalorder %s20, 1
      %s324 = scalar_select %p323, %s20, 1
      %s325 = smul.addr %s324, 32
      %s326 = smul.addr %s325, 8
      %s327 = scalar_lea.vmem %s0, %s326
      %p328 = scmp.lt.s32.totalorder %s20, 1
      %s329 = scalar_select %p328, %s20, 1
      %s330 = smul.addr %s329, 32
      %s331 = smul.addr %s330, 8
      %s332 = scalar_lea.vmem %s9, %s331
      %v333 = vld [vmem:[%s327] sm:$0xff]
      %v334 = vld [vmem:[%s327 + $0x8] sm:$0xff]
      %v335 = vld [vmem:[%s327 + $0x10] sm:$0xff]
      %v336 = vld [vmem:[%s327 + $0x18] sm:$0xff]
      %v337 = vld [vmem:[%s327 + $0x20] sm:$0xff]
      %v338 = vld [vmem:[%s327 + $0x28] sm:$0xff]
      %v339 = vld [vmem:[%s327 + $0x30] sm:$0xff]
      %v340 = vld [vmem:[%s327 + $0x38] sm:$0xff]
      %v341 = vld [vmem:[%s327 + $0x40] sm:$0xff]
      %v342 = vld [vmem:[%s327 + $0x48] sm:$0xff]
      %v343 = vld [vmem:[%s327 + $0x50] sm:$0xff]
      %v344 = vld [vmem:[%s327 + $0x58] sm:$0xff]
      %v345 = vld [vmem:[%s327 + $0x60] sm:$0xff]
      %v346 = vld [vmem:[%s327 + $0x68] sm:$0xff]
      %v347 = vld [vmem:[%s327 + $0x70] sm:$0xff]
      %v348 = vld [vmem:[%s327 + $0x78] sm:$0xff]
      %v349 = vld [vmem:[%s327 + $0x80] sm:$0xff]
      %v350 = vld [vmem:[%s327 + $0x88] sm:$0xff]
      %v351 = vld [vmem:[%s327 + $0x90] sm:$0xff]
      %v352 = vld [vmem:[%s327 + $0x98] sm:$0xff]
      %v353 = vld [vmem:[%s327 + $0xa0] sm:$0xff]
      %v354 = vld [vmem:[%s327 + $0xa8] sm:$0xff]
      %v355 = vld [vmem:[%s327 + $0xb0] sm:$0xff]
      %v356 = vld [vmem:[%s327 + $0xb8] sm:$0xff]
      %v357 = vld [vmem:[%s327 + $0xc0] sm:$0xff]
      %v358 = vld [vmem:[%s327 + $0xc8] sm:$0xff]
      %v359 = vld [vmem:[%s327 + $0xd0] sm:$0xff]
      %v360 = vld [vmem:[%s327 + $0xd8] sm:$0xff]
      %v361 = vld [vmem:[%s327 + $0xe0] sm:$0xff]
      %v362 = vld [vmem:[%s327 + $0xe8] sm:$0xff]
      %v363 = vld [vmem:[%s327 + $0xf0] sm:$0xff]
      %v364 = vld [vmem:[%s327 + $0xf8] sm:$0xff]
      %v365 = vld [vmem:[%s1] sm:$0xf]
      %v366 = vld [vmem:[%s2] sm:$0x1]
      %v368 = vperm.slane %v366, 0
      %vm370 = vcmask 31744
      %v372 = vsel %vm370, %v333, 0
      %v375 = vsel %vm370, %v334, 0
      %v378 = vsel %vm370, %v335, 0
      %v381 = vsel %vm370, %v336, 0
      %v384 = vsel %vm370, %v337, 0
      %v387 = vsel %vm370, %v338, 0
      %v390 = vsel %vm370, %v339, 0
      %v393 = vsel %vm370, %v340, 0
      %v396 = vsel %vm370, %v341, 0
      %v399 = vsel %vm370, %v342, 0
      %v402 = vsel %vm370, %v343, 0
      %v405 = vsel %vm370, %v344, 0
      %v408 = vsel %vm370, %v345, 0
      %v411 = vsel %vm370, %v346, 0
      %v414 = vsel %vm370, %v347, 0
      %v417 = vsel %vm370, %v348, 0
      %v420 = vsel %vm370, %v349, 0
      %v423 = vsel %vm370, %v350, 0
      %v426 = vsel %vm370, %v351, 0
      %v429 = vsel %vm370, %v352, 0
      %v432 = vsel %vm370, %v353, 0
      %v435 = vsel %vm370, %v354, 0
      %v438 = vsel %vm370, %v355, 0
      %v441 = vsel %vm370, %v356, 0
      %v444 = vsel %vm370, %v357, 0
      %v447 = vsel %vm370, %v358, 0
      %v450 = vsel %vm370, %v359, 0
      %v453 = vsel %vm370, %v360, 0
      %v456 = vsel %vm370, %v361, 0
      %v459 = vsel %vm370, %v362, 0
      %v462 = vsel %vm370, %v363, 0
      %v465 = vsel %vm370, %v364, 0
      %vm467 = vcmask 1043456
      %v469 = vsel %vm467, %v365, 0
      %471 = vmatpush.msra.mxu0 0.0
      %472 = vmatpush.msra.mxu0 0.0
      %473 = vmatpush.msra.mxu0 0.0
      %474 = vmatpush.msra.mxu0 0.0
      %475 = vmatpush.msra.mxu0 0.0
      %476 = vmatpush.msra.mxu0 0.0
      %477 = vmatpush.msra.mxu0 0.0
      %478 = vmatpush.msra.mxu0 0.0
      %479 = vmatpush.msra.mxu0 0.0
      %480 = vmatpush.msra.mxu0 0.0
      %481 = vmatpush.msra.mxu0 0.0
      %482 = vmatpush.msra.mxu0 0.0
      %483 = vmatpush.msra.mxu0 0.0
      %484 = vmatpush.msra.mxu0 0.0
      %485 = vmatpush.msra.mxu0 0.0
      %486 = vmatpush.msra.mxu0 %v469
      %487 = vmatmul.f32.gmra.mxu0 %v372
      %v488 = vpop.f32.mrf.mxu0
      %v489 = vadd.f32 %v368, %v488
      %490 = vmatmul.f32.gmra.mxu0 %v375
      %v491 = vpop.f32.mrf.mxu0
      %v492 = vadd.f32 %v368, %v491
      %493 = vmatmul.f32.gmra.mxu0 %v378
      %v494 = vpop.f32.mrf.mxu0
      %v495 = vadd.f32 %v368, %v494
      %496 = vmatmul.f32.gmra.mxu0 %v381
      %v497 = vpop.f32.mrf.mxu0
      %v498 = vadd.f32 %v368, %v497
      %499 = vmatmul.f32.gmra.mxu0 %v384
      %v500 = vpop.f32.mrf.mxu0
      %v501 = vadd.f32 %v368, %v500
      %502 = vmatmul.f32.gmra.mxu0 %v387
      %v503 = vpop.f32.mrf.mxu0
      %v504 = vadd.f32 %v368, %v503
      %505 = vmatmul.f32.gmra.mxu0 %v390
      %v506 = vpop.f32.mrf.mxu0
      %v507 = vadd.f32 %v368, %v506
      %508 = vmatmul.f32.gmra.mxu0 %v393
      %v509 = vpop.f32.mrf.mxu0
      %v510 = vadd.f32 %v368, %v509
      %511 = vmatmul.f32.gmra.mxu0 %v396
      %v512 = vpop.f32.mrf.mxu0
      %v513 = vadd.f32 %v368, %v512
      %514 = vmatmul.f32.gmra.mxu0 %v399
      %v515 = vpop.f32.mrf.mxu0
      %v516 = vadd.f32 %v368, %v515
      %517 = vmatmul.f32.gmra.mxu0 %v402
      %v518 = vpop.f32.mrf.mxu0
      %v519 = vadd.f32 %v368, %v518
      %520 = vmatmul.f32.gmra.mxu0 %v405
      %v521 = vpop.f32.mrf.mxu0
      %v522 = vadd.f32 %v368, %v521
      %523 = vmatmul.f32.gmra.mxu0 %v408
      %v524 = vpop.f32.mrf.mxu0
      %v525 = vadd.f32 %v368, %v524
      %526 = vmatmul.f32.gmra.mxu0 %v411
      %v527 = vpop.f32.mrf.mxu0
      %v528 = vadd.f32 %v368, %v527
      %529 = vmatmul.f32.gmra.mxu0 %v414
      %v530 = vpop.f32.mrf.mxu0
      %v531 = vadd.f32 %v368, %v530
      %532 = vmatmul.f32.gmra.mxu0 %v417
      %v533 = vpop.f32.mrf.mxu0
      %v534 = vadd.f32 %v368, %v533
      %535 = vmatmul.f32.gmra.mxu0 %v420
      %v536 = vpop.f32.mrf.mxu0
      %v537 = vadd.f32 %v368, %v536
      %538 = vmatmul.f32.gmra.mxu0 %v423
      %v539 = vpop.f32.mrf.mxu0
      %v540 = vadd.f32 %v368, %v539
      %541 = vmatmul.f32.gmra.mxu0 %v426
      %v542 = vpop.f32.mrf.mxu0
      %v543 = vadd.f32 %v368, %v542
      %544 = vmatmul.f32.gmra.mxu0 %v429
      %v545 = vpop.f32.mrf.mxu0
      %v546 = vadd.f32 %v368, %v545
      %547 = vmatmul.f32.gmra.mxu0 %v432
      %v548 = vpop.f32.mrf.mxu0
      %v549 = vadd.f32 %v368, %v548
      %550 = vmatmul.f32.gmra.mxu0 %v435
      %v551 = vpop.f32.mrf.mxu0
      %v552 = vadd.f32 %v368, %v551
      %553 = vmatmul.f32.gmra.mxu0 %v438
      %v554 = vpop.f32.mrf.mxu0
      %v555 = vadd.f32 %v368, %v554
      %556 = vmatmul.f32.gmra.mxu0 %v441
      %v557 = vpop.f32.mrf.mxu0
      %v558 = vadd.f32 %v368, %v557
      %559 = vmatmul.f32.gmra.mxu0 %v444
      %v560 = vpop.f32.mrf.mxu0
      %v561 = vadd.f32 %v368, %v560
      %562 = vmatmul.f32.gmra.mxu0 %v447
      %v563 = vpop.f32.mrf.mxu0
      %v564 = vadd.f32 %v368, %v563
      %565 = vmatmul.f32.gmra.mxu0 %v450
      %v566 = vpop.f32.mrf.mxu0
      %v567 = vadd.f32 %v368, %v566
      %568 = vmatmul.f32.gmra.mxu0 %v453
      %v569 = vpop.f32.mrf.mxu0
      %v570 = vadd.f32 %v368, %v569
      %571 = vmatmul.f32.gmra.mxu0 %v456
      %v572 = vpop.f32.mrf.mxu0
      %v573 = vadd.f32 %v368, %v572
      %574 = vmatmul.f32.gmra.mxu0 %v459
      %v575 = vpop.f32.mrf.mxu0
      %v576 = vadd.f32 %v368, %v575
      %577 = vmatmul.f32.gmra.mxu0 %v462
      %v578 = vpop.f32.mrf.mxu0
      %v579 = vadd.f32 %v368, %v578
      %580 = vmatmul.f32.gmra.mxu0 %v465
      %v581 = vpop.f32.mrf.mxu0
      %v582 = vadd.f32 %v368, %v581
      %583 = vdwg.mxu0
      %v584 = vmax.f32 %v489, 0.0
      %v585 = vmax.f32 %v492, 0.0
      %v586 = vmax.f32 %v495, 0.0
      %v587 = vmax.f32 %v498, 0.0
      %v588 = vmax.f32 %v501, 0.0
      %v589 = vmax.f32 %v504, 0.0
      %v590 = vmax.f32 %v507, 0.0
      %v591 = vmax.f32 %v510, 0.0
      %v592 = vmax.f32 %v513, 0.0
      %v593 = vmax.f32 %v516, 0.0
      %v594 = vmax.f32 %v519, 0.0
      %v595 = vmax.f32 %v522, 0.0
      %v596 = vmax.f32 %v525, 0.0
      %v597 = vmax.f32 %v528, 0.0
      %v598 = vmax.f32 %v531, 0.0
      %v599 = vmax.f32 %v534, 0.0
      %v600 = vmax.f32 %v537, 0.0
      %v601 = vmax.f32 %v540, 0.0
      %v602 = vmax.f32 %v543, 0.0
      %v603 = vmax.f32 %v546, 0.0
      %v604 = vmax.f32 %v549, 0.0
      %v605 = vmax.f32 %v552, 0.0
      %v606 = vmax.f32 %v555, 0.0
      %v607 = vmax.f32 %v558, 0.0
      %v608 = vmax.f32 %v561, 0.0
      %v609 = vmax.f32 %v564, 0.0
      %v610 = vmax.f32 %v567, 0.0
      %v611 = vmax.f32 %v570, 0.0
      %v612 = vmax.f32 %v573, 0.0
      %v613 = vmax.f32 %v576, 0.0
      %v614 = vmax.f32 %v579, 0.0
      %v615 = vmax.f32 %v582, 0.0
      %616 = vst.msk [vmem:[#allocation2] sm:$0xff] %vm370, 0.0
      %617 = vst.msk [vmem:[#allocation2 + $0x8] sm:$0xff] %vm370, 0.0
      %vm618 = vcmask 25600
      %619 = vst.msk [vmem:[#allocation2 + $0x10] sm:$0x3] %vm618, 0.0
      %620 = vst.msk [vmem:[#allocation2 + $0x18] sm:$0xff] %vm370, 0.0
      %621 = vst.msk [vmem:[#allocation2 + $0x20] sm:$0xff] %vm370, 0.0
      %622 = vst.msk [vmem:[#allocation2 + $0x28] sm:$0x3] %vm618, 0.0
      %623 = vst.msk [vmem:[#allocation2 + $0x30] sm:$0xff] %vm370, 0.0
      %624 = vst.msk [vmem:[#allocation2 + $0x38] sm:$0xff] %vm370, 0.0
      %625 = vst.msk [vmem:[#allocation2 + $0x40] sm:$0x3] %vm618, 0.0
      %626 = vst.msk [vmem:[#allocation2 + $0x48] sm:$0xff] %vm370, 0.0
      %627 = vst.msk [vmem:[#allocation2 + $0x50] sm:$0xff] %vm370, 0.0
      %628 = vst.msk [vmem:[#allocation2 + $0x58] sm:$0x3] %vm618, 0.0
      %629 = vst.msk [vmem:[#allocation2 + $0x60] sm:$0xff] %vm370, 0.0
      %630 = vst.msk [vmem:[#allocation2 + $0x68] sm:$0xff] %vm370, 0.0
      %631 = vst.msk [vmem:[#allocation2 + $0x70] sm:$0x3] %vm618, 0.0
      %632 = vst.msk [vmem:[#allocation2 + $0x78] sm:$0xff] %vm370, 0.0
      %633 = vst.msk [vmem:[#allocation2 + $0x80] sm:$0xff] %vm370, 0.0
      %634 = vst.msk [vmem:[#allocation2 + $0x88] sm:$0x3] %vm618, 0.0
      %635 = vst.msk [vmem:[#allocation2 + $0x90] sm:$0xff] %vm370, 0.0
      %636 = vst.msk [vmem:[#allocation2 + $0x98] sm:$0xff] %vm370, 0.0
      %637 = vst.msk [vmem:[#allocation2 + $0xa0] sm:$0x3] %vm618, 0.0
      %638 = vst.msk [vmem:[#allocation2 + $0xa8] sm:$0xff] %vm370, 0.0
      %639 = vst.msk [vmem:[#allocation2 + $0xb0] sm:$0xff] %vm370, 0.0
      %640 = vst.msk [vmem:[#allocation2 + $0xb8] sm:$0x3] %vm618, 0.0
      %641 = vst.msk [vmem:[#allocation2 + $0xc0] sm:$0xff] %vm370, 0.0
      %642 = vst.msk [vmem:[#allocation2 + $0xc8] sm:$0xff] %vm370, 0.0
      %643 = vst.msk [vmem:[#allocation2 + $0xd0] sm:$0x3] %vm618, 0.0
      %644 = vst.msk [vmem:[#allocation2 + $0xd8] sm:$0xff] %vm370, 0.0
      %645 = vst.msk [vmem:[#allocation2 + $0xe0] sm:$0xff] %vm370, 0.0
      %646 = vst.msk [vmem:[#allocation2 + $0xe8] sm:$0x3] %vm618, 0.0
      %647 = vst.msk [vmem:[#allocation2 + $0xf0] sm:$0xff] %vm370, 0.0
      %648 = vst.msk [vmem:[#allocation2 + $0xf8] sm:$0xff] %vm370, 0.0
      %649 = vst.msk [vmem:[#allocation2 + $0x100] sm:$0x3] %vm618, 0.0
      %650 = vst.msk [vmem:[#allocation2 + $0x108] sm:$0xff] %vm370, 0.0
      %651 = vst.msk [vmem:[#allocation2 + $0x110] sm:$0xff] %vm370, 0.0
      %652 = vst.msk [vmem:[#allocation2 + $0x118] sm:$0x3] %vm618, 0.0
      %653 = vst.msk [vmem:[#allocation2 + $0x120] sm:$0xff] %vm370, 0.0
      %654 = vst.msk [vmem:[#allocation2 + $0x128] sm:$0xff] %vm370, 0.0
      %655 = vst.msk [vmem:[#allocation2 + $0x130] sm:$0x3] %vm618, 0.0
      %656 = vst.msk [vmem:[#allocation2 + $0x138] sm:$0xff] %vm370, 0.0
      %657 = vst.msk [vmem:[#allocation2 + $0x140] sm:$0xff] %vm370, 0.0
      %658 = vst.msk [vmem:[#allocation2 + $0x148] sm:$0x3] %vm618, 0.0
      %659 = vst.msk [vmem:[#allocation2 + $0x150] sm:$0xff] %vm370, 0.0
      %660 = vst.msk [vmem:[#allocation2 + $0x158] sm:$0xff] %vm370, 0.0
      %661 = vst.msk [vmem:[#allocation2 + $0x160] sm:$0x3] %vm618, 0.0
      %662 = vst.msk [vmem:[#allocation2 + $0x168] sm:$0xff] %vm370, 0.0
      %663 = vst.msk [vmem:[#allocation2 + $0x170] sm:$0xff] %vm370, 0.0
      %664 = vst.msk [vmem:[#allocation2 + $0x178] sm:$0x3] %vm618, 0.0
      %665 = vst.msk [vmem:[#allocation2 + $0x180] sm:$0xff] %vm370, 0.0
      %666 = vst.msk [vmem:[#allocation2 + $0x188] sm:$0xff] %vm370, 0.0
      %667 = vst.msk [vmem:[#allocation2 + $0x190] sm:$0x3] %vm618, 0.0
      %668 = vst.msk [vmem:[#allocation2 + $0x198] sm:$0xff] %vm370, 0.0
      %669 = vst.msk [vmem:[#allocation2 + $0x1a0] sm:$0xff] %vm370, 0.0
      %670 = vst.msk [vmem:[#allocation2 + $0x1a8] sm:$0x3] %vm618, 0.0
      %s671 = scalar_lea.vmem [#allocation2], 24
      %672 = vst.msk [vmem:[%s671 + $0x1] sm:$0xff] %vm370, %v584
      %673 = vst.msk [vmem:[%s671 + $0x9] sm:$0xff] %vm370, %v585
      %674 = vst.msk [vmem:[%s671 + $0x19] sm:$0xff] %vm370, %v586
      %675 = vst.msk [vmem:[%s671 + $0x21] sm:$0xff] %vm370, %v587
      %676 = vst.msk [vmem:[%s671 + $0x31] sm:$0xff] %vm370, %v588
      %677 = vst.msk [vmem:[%s671 + $0x39] sm:$0xff] %vm370, %v589
      %678 = vst.msk [vmem:[%s671 + $0x49] sm:$0xff] %vm370, %v590
      %679 = vst.msk [vmem:[%s671 + $0x51] sm:$0xff] %vm370, %v591
      %680 = vst.msk [vmem:[%s671 + $0x61] sm:$0xff] %vm370, %v592
      %681 = vst.msk [vmem:[%s671 + $0x69] sm:$0xff] %vm370, %v593
      %682 = vst.msk [vmem:[%s671 + $0x79] sm:$0xff] %vm370, %v594
      %683 = vst.msk [vmem:[%s671 + $0x81] sm:$0xff] %vm370, %v595
      %684 = vst.msk [vmem:[%s671 + $0x91] sm:$0xff] %vm370, %v596
      %685 = vst.msk [vmem:[%s671 + $0x99] sm:$0xff] %vm370, %v597
      %686 = vst.msk [vmem:[%s671 + $0xa9] sm:$0xff] %vm370, %v598
      %687 = vst.msk [vmem:[%s671 + $0xb1] sm:$0xff] %vm370, %v599
      %688 = vst.msk [vmem:[%s671 + $0xc1] sm:$0xff] %vm370, %v600
      %689 = vst.msk [vmem:[%s671 + $0xc9] sm:$0xff] %vm370, %v601
      %690 = vst.msk [vmem:[%s671 + $0xd9] sm:$0xff] %vm370, %v602
      %691 = vst.msk [vmem:[%s671 + $0xe1] sm:$0xff] %vm370, %v603
      %692 = vst.msk [vmem:[%s671 + $0xf1] sm:$0xff] %vm370, %v604
      %693 = vst.msk [vmem:[%s671 + $0xf9] sm:$0xff] %vm370, %v605
      %694 = vst.msk [vmem:[%s671 + $0x109] sm:$0xff] %vm370, %v606
      %695 = vst.msk [vmem:[%s671 + $0x111] sm:$0xff] %vm370, %v607
      %696 = vst.msk [vmem:[%s671 + $0x121] sm:$0xff] %vm370, %v608
      %697 = vst.msk [vmem:[%s671 + $0x129] sm:$0xff] %vm370, %v609
      %698 = vst.msk [vmem:[%s671 + $0x139] sm:$0xff] %vm370, %v610
      %699 = vst.msk [vmem:[%s671 + $0x141] sm:$0xff] %vm370, %v611
      %700 = vst.msk [vmem:[%s671 + $0x151] sm:$0xff] %vm370, %v612
      %701 = vst.msk [vmem:[%s671 + $0x159] sm:$0xff] %vm370, %v613
      %702 = vst.msk [vmem:[%s671 + $0x169] sm:$0xff] %vm370, %v614
      %703 = vst.msk [vmem:[%s671 + $0x171] sm:$0xff] %vm370, %v615
      %v704 = vld [vmem:[#allocation2] sm:$0xff]
      %v705 = vld [vmem:[#allocation2 + $0x8] sm:$0xff]
      %v706 = vld [vmem:[#allocation2 + $0x10] sm:$0x3]
      %v707 = vld [vmem:[#allocation2 + $0x18] sm:$0xff]
      %v708 = vld [vmem:[#allocation2 + $0x20] sm:$0xff]
      %v709 = vld [vmem:[#allocation2 + $0x28] sm:$0x3]
      %v710 = vld [vmem:[#allocation2 + $0x30] sm:$0xff]
      %v711 = vld [vmem:[#allocation2 + $0x38] sm:$0xff]
      %v712 = vld [vmem:[#allocation2 + $0x40] sm:$0x3]
      %v713 = vld [vmem:[#allocation2 + $0x48] sm:$0xff]
      %v714 = vld [vmem:[#allocation2 + $0x50] sm:$0xff]
      %v715 = vld [vmem:[#allocation2 + $0x58] sm:$0x3]
      %v716 = vld [vmem:[#allocation2 + $0x60] sm:$0xff]
      %v717 = vld [vmem:[#allocation2 + $0x68] sm:$0xff]
      %v718 = vld [vmem:[#allocation2 + $0x70] sm:$0x3]
      %v719 = vld [vmem:[#allocation2 + $0x78] sm:$0xff]
      %v720 = vld [vmem:[#allocation2 + $0x80] sm:$0xff]
      %v721 = vld [vmem:[#allocation2 + $0x88] sm:$0x3]
      %v722 = vld [vmem:[#allocation2 + $0x90] sm:$0xff]
      %v723 = vld [vmem:[#allocation2 + $0x98] sm:$0xff]
      %v724 = vld [vmem:[#allocation2 + $0xa0] sm:$0x3]
      %v725 = vld [vmem:[#allocation2 + $0xa8] sm:$0xff]
      %v726 = vld [vmem:[#allocation2 + $0xb0] sm:$0xff]
      %v727 = vld [vmem:[#allocation2 + $0xb8] sm:$0x3]
      %v728 = vld [vmem:[#allocation2 + $0xc0] sm:$0xff]
      %v729 = vld [vmem:[#allocation2 + $0xc8] sm:$0xff]
      %v730 = vld [vmem:[#allocation2 + $0xd0] sm:$0x3]
      %v731 = vld [vmem:[#allocation2 + $0xd8] sm:$0xff]
      %v732 = vld [vmem:[#allocation2 + $0xe0] sm:$0xff]
      %v733 = vld [vmem:[#allocation2 + $0xe8] sm:$0x3]
      %v734 = vld [vmem:[#allocation2 + $0xf0] sm:$0xff]
      %v735 = vld [vmem:[#allocation2 + $0xf8] sm:$0xff]
      %v736 = vld [vmem:[#allocation2 + $0x100] sm:$0x3]
      %v737 = vld [vmem:[#allocation2 + $0x108] sm:$0xff]
      %v738 = vld [vmem:[#allocation2 + $0x110] sm:$0xff]
      %v739 = vld [vmem:[#allocation2 + $0x118] sm:$0x3]
      %v740 = vld [vmem:[#allocation2 + $0x120] sm:$0xff]
      %v741 = vld [vmem:[#allocation2 + $0x128] sm:$0xff]
      %v742 = vld [vmem:[#allocation2 + $0x130] sm:$0x3]
      %v743 = vld [vmem:[#allocation2 + $0x138] sm:$0xff]
      %v744 = vld [vmem:[#allocation2 + $0x140] sm:$0xff]
      %v745 = vld [vmem:[#allocation2 + $0x148] sm:$0x3]
      %v746 = vld [vmem:[#allocation2 + $0x150] sm:$0xff]
      %v747 = vld [vmem:[#allocation2 + $0x158] sm:$0xff]
      %v748 = vld [vmem:[#allocation2 + $0x160] sm:$0x3]
      %v749 = vld [vmem:[#allocation2 + $0x168] sm:$0xff]
      %v750 = vld [vmem:[#allocation2 + $0x170] sm:$0xff]
      %v751 = vld [vmem:[#allocation2 + $0x178] sm:$0x3]
      %v752 = vld [vmem:[#allocation2 + $0x180] sm:$0xff]
      %v753 = vld [vmem:[#allocation2 + $0x188] sm:$0xff]
      %v754 = vld [vmem:[#allocation2 + $0x190] sm:$0x3]
      %v755 = vld [vmem:[#allocation2 + $0x198] sm:$0xff]
      %v756 = vld [vmem:[#allocation2 + $0x1a0] sm:$0xff]
      %v757 = vld [vmem:[#allocation2 + $0x1a8] sm:$0x3]
      %vm806 = vcmask 1046528
      %v807 = vrot.slane %v704, 1
      %v808 = vrot.slane %v705, 1
      %v809 = vsel %vm806, %v807, %v808
      %v810 = vrot.slane %v706, 1
      %v811 = vsel %vm806, %v808, %v810
      %v812 = vrot.slane %v707, 1
      %v813 = vrot.slane %v708, 1
      %v814 = vsel %vm806, %v812, %v813
      %v815 = vrot.slane %v709, 1
      %v816 = vsel %vm806, %v813, %v815
      %v817 = vrot.slane %v710, 1
      %v818 = vrot.slane %v711, 1
      %v819 = vsel %vm806, %v817, %v818
      %v820 = vrot.slane %v712, 1
      %v821 = vsel %vm806, %v818, %v820
      %v822 = vrot.slane %v713, 1
      %v823 = vrot.slane %v714, 1
      %v824 = vsel %vm806, %v822, %v823
      %v825 = vrot.slane %v715, 1
      %v826 = vsel %vm806, %v823, %v825
      %v827 = vrot.slane %v716, 1
      %v828 = vrot.slane %v717, 1
      %v829 = vsel %vm806, %v827, %v828
      %v830 = vrot.slane %v718, 1
      %v831 = vsel %vm806, %v828, %v830
      %v832 = vrot.slane %v719, 1
      %v833 = vrot.slane %v720, 1
      %v834 = vsel %vm806, %v832, %v833
      %v835 = vrot.slane %v721, 1
      %v836 = vsel %vm806, %v833, %v835
      %v837 = vrot.slane %v722, 1
      %v838 = vrot.slane %v723, 1
      %v839 = vsel %vm806, %v837, %v838
      %v840 = vrot.slane %v724, 1
      %v841 = vsel %vm806, %v838, %v840
      %v842 = vrot.slane %v725, 1
      %v843 = vrot.slane %v726, 1
      %v844 = vsel %vm806, %v842, %v843
      %v845 = vrot.slane %v727, 1
      %v846 = vsel %vm806, %v843, %v845
      %v847 = vrot.slane %v728, 1
      %v848 = vrot.slane %v729, 1
      %v849 = vsel %vm806, %v847, %v848
      %v850 = vrot.slane %v730, 1
      %v851 = vsel %vm806, %v848, %v850
      %v852 = vrot.slane %v731, 1
      %v853 = vrot.slane %v732, 1
      %v854 = vsel %vm806, %v852, %v853
      %v855 = vrot.slane %v733, 1
      %v856 = vsel %vm806, %v853, %v855
      %v857 = vrot.slane %v734, 1
      %v858 = vrot.slane %v735, 1
      %v859 = vsel %vm806, %v857, %v858
      %v860 = vrot.slane %v736, 1
      %v861 = vsel %vm806, %v858, %v860
      %v862 = vrot.slane %v737, 1
      %v863 = vrot.slane %v738, 1
      %v864 = vsel %vm806, %v862, %v863
      %v865 = vrot.slane %v739, 1
      %v866 = vsel %vm806, %v863, %v865
      %v867 = vrot.slane %v740, 1
      %v868 = vrot.slane %v741, 1
      %v869 = vsel %vm806, %v867, %v868
      %v870 = vrot.slane %v742, 1
      %v871 = vsel %vm806, %v868, %v870
      %v872 = vrot.slane %v743, 1
      %v873 = vrot.slane %v744, 1
      %v874 = vsel %vm806, %v872, %v873
      %v875 = vrot.slane %v745, 1
      %v876 = vsel %vm806, %v873, %v875
      %v877 = vrot.slane %v746, 1
      %v878 = vrot.slane %v747, 1
      %v879 = vsel %vm806, %v877, %v878
      %v880 = vrot.slane %v748, 1
      %v881 = vsel %vm806, %v878, %v880
      %v882 = vrot.slane %v749, 1
      %v883 = vrot.slane %v750, 1
      %v884 = vsel %vm806, %v882, %v883
      %v885 = vrot.slane %v751, 1
      %v886 = vsel %vm806, %v883, %v885
      %vm887 = vcmask 1045504
      %v888 = vrot.slane %v704, 2
      %v889 = vrot.slane %v705, 2
      %v890 = vsel %vm887, %v888, %v889
      %v891 = vrot.slane %v706, 2
      %v892 = vsel %vm887, %v889, %v891
      %v893 = vrot.slane %v707, 2
      %v894 = vrot.slane %v708, 2
      %v895 = vsel %vm887, %v893, %v894
      %v896 = vrot.slane %v709, 2
      %v897 = vsel %vm887, %v894, %v896
      %v898 = vrot.slane %v710, 2
      %v899 = vrot.slane %v711, 2
      %v900 = vsel %vm887, %v898, %v899
      %v901 = vrot.slane %v712, 2
      %v902 = vsel %vm887, %v899, %v901
      %v903 = vrot.slane %v713, 2
      %v904 = vrot.slane %v714, 2
      %v905 = vsel %vm887, %v903, %v904
      %v906 = vrot.slane %v715, 2
      %v907 = vsel %vm887, %v904, %v906
      %v908 = vrot.slane %v716, 2
      %v909 = vrot.slane %v717, 2
      %v910 = vsel %vm887, %v908, %v909
      %v911 = vrot.slane %v718, 2
      %v912 = vsel %vm887, %v909, %v911
      %v913 = vrot.slane %v719, 2
      %v914 = vrot.slane %v720, 2
      %v915 = vsel %vm887, %v913, %v914
      %v916 = vrot.slane %v721, 2
      %v917 = vsel %vm887, %v914, %v916
      %v918 = vrot.slane %v722, 2
      %v919 = vrot.slane %v723, 2
      %v920 = vsel %vm887, %v918, %v919
      %v921 = vrot.slane %v724, 2
      %v922 = vsel %vm887, %v919, %v921
      %v923 = vrot.slane %v725, 2
      %v924 = vrot.slane %v726, 2
      %v925 = vsel %vm887, %v923, %v924
      %v926 = vrot.slane %v727, 2
      %v927 = vsel %vm887, %v924, %v926
      %v928 = vrot.slane %v728, 2
      %v929 = vrot.slane %v729, 2
      %v930 = vsel %vm887, %v928, %v929
      %v931 = vrot.slane %v730, 2
      %v932 = vsel %vm887, %v929, %v931
      %v933 = vrot.slane %v731, 2
      %v934 = vrot.slane %v732, 2
      %v935 = vsel %vm887, %v933, %v934
      %v936 = vrot.slane %v733, 2
      %v937 = vsel %vm887, %v934, %v936
      %v938 = vrot.slane %v734, 2
      %v939 = vrot.slane %v735, 2
      %v940 = vsel %vm887, %v938, %v939
      %v941 = vrot.slane %v736, 2
      %v942 = vsel %vm887, %v939, %v941
      %v943 = vrot.slane %v737, 2
      %v944 = vrot.slane %v738, 2
      %v945 = vsel %vm887, %v943, %v944
      %v946 = vrot.slane %v739, 2
      %v947 = vsel %vm887, %v944, %v946
      %v948 = vrot.slane %v740, 2
      %v949 = vrot.slane %v741, 2
      %v950 = vsel %vm887, %v948, %v949
      %v951 = vrot.slane %v742, 2
      %v952 = vsel %vm887, %v949, %v951
      %v953 = vrot.slane %v743, 2
      %v954 = vrot.slane %v744, 2
      %v955 = vsel %vm887, %v953, %v954
      %v956 = vrot.slane %v745, 2
      %v957 = vsel %vm887, %v954, %v956
      %v958 = vrot.slane %v746, 2
      %v959 = vrot.slane %v747, 2
      %v960 = vsel %vm887, %v958, %v959
      %v961 = vrot.slane %v748, 2
      %v962 = vsel %vm887, %v959, %v961
      %v963 = vrot.slane %v749, 2
      %v964 = vrot.slane %v750, 2
      %v965 = vsel %vm887, %v963, %v964
      %v966 = vrot.slane %v751, 2
      %v967 = vsel %vm887, %v964, %v966
      %v971 = vrot.slane %v752, 1
      %v972 = vrot.slane %v753, 1
      %v973 = vsel %vm806, %v971, %v972
      %v974 = vrot.slane %v754, 1
      %v975 = vsel %vm806, %v972, %v974
      %v976 = vrot.slane %v752, 2
      %v977 = vrot.slane %v753, 2
      %v978 = vsel %vm887, %v976, %v977
      %v979 = vrot.slane %v754, 2
      %v980 = vsel %vm887, %v977, %v979
      %v984 = vrot.slane %v755, 1
      %v985 = vrot.slane %v756, 1
      %v986 = vsel %vm806, %v984, %v985
      %v987 = vrot.slane %v757, 1
      %v988 = vsel %vm806, %v985, %v987
      %v989 = vrot.slane %v755, 2
      %v990 = vrot.slane %v756, 2
      %v991 = vsel %vm887, %v989, %v990
      %v992 = vrot.slane %v757, 2
      %v993 = vsel %vm887, %v990, %v992
      %994 = vrot.lane.b32.xlu0 %v809, 4
      %v995 = vpop.permute.xlu0 %994
      %996 = vrot.lane.b32.xlu0 %v811, 4
      %v997 = vpop.permute.xlu0 %996
      %998 = vrot.lane.b32.xlu0 %v814, 4
      %v999 = vpop.permute.xlu0 %998
      %1000 = vrot.lane.b32.xlu0 %v816, 4
      %v1001 = vpop.permute.xlu0 %1000
      %1002 = vrot.lane.b32.xlu0 %v819, 4
      %v1003 = vpop.permute.xlu0 %1002
      %1004 = vrot.lane.b32.xlu0 %v821, 4
      %v1005 = vpop.permute.xlu0 %1004
      %1006 = vrot.lane.b32.xlu0 %v824, 4
      %v1007 = vpop.permute.xlu0 %1006
      %1008 = vrot.lane.b32.xlu0 %v826, 4
      %v1009 = vpop.permute.xlu0 %1008
      %1010 = vrot.lane.b32.xlu0 %v829, 4
      %v1011 = vpop.permute.xlu0 %1010
      %1012 = vrot.lane.b32.xlu0 %v831, 4
      %v1013 = vpop.permute.xlu0 %1012
      %1014 = vrot.lane.b32.xlu0 %v834, 4
      %v1015 = vpop.permute.xlu0 %1014
      %1016 = vrot.lane.b32.xlu0 %v836, 4
      %v1017 = vpop.permute.xlu0 %1016
      %1018 = vrot.lane.b32.xlu0 %v839, 4
      %v1019 = vpop.permute.xlu0 %1018
      %1020 = vrot.lane.b32.xlu0 %v841, 4
      %v1021 = vpop.permute.xlu0 %1020
      %1022 = vrot.lane.b32.xlu0 %v844, 4
      %v1023 = vpop.permute.xlu0 %1022
      %1024 = vrot.lane.b32.xlu0 %v846, 4
      %v1025 = vpop.permute.xlu0 %1024
      %1026 = vrot.lane.b32.xlu0 %v849, 4
      %v1027 = vpop.permute.xlu0 %1026
      %1028 = vrot.lane.b32.xlu0 %v851, 4
      %v1029 = vpop.permute.xlu0 %1028
      %1030 = vrot.lane.b32.xlu0 %v854, 4
      %v1031 = vpop.permute.xlu0 %1030
      %1032 = vrot.lane.b32.xlu0 %v856, 4
      %v1033 = vpop.permute.xlu0 %1032
      %1034 = vrot.lane.b32.xlu0 %v859, 4
      %v1035 = vpop.permute.xlu0 %1034
      %1036 = vrot.lane.b32.xlu0 %v861, 4
      %v1037 = vpop.permute.xlu0 %1036
      %1038 = vrot.lane.b32.xlu0 %v864, 4
      %v1039 = vpop.permute.xlu0 %1038
      %1040 = vrot.lane.b32.xlu0 %v866, 4
      %v1041 = vpop.permute.xlu0 %1040
      %1042 = vrot.lane.b32.xlu0 %v869, 4
      %v1043 = vpop.permute.xlu0 %1042
      %1044 = vrot.lane.b32.xlu0 %v871, 4
      %v1045 = vpop.permute.xlu0 %1044
      %1046 = vrot.lane.b32.xlu0 %v874, 4
      %v1047 = vpop.permute.xlu0 %1046
      %1048 = vrot.lane.b32.xlu0 %v876, 4
      %v1049 = vpop.permute.xlu0 %1048
      %1050 = vrot.lane.b32.xlu0 %v879, 4
      %v1051 = vpop.permute.xlu0 %1050
      %1052 = vrot.lane.b32.xlu0 %v881, 4
      %v1053 = vpop.permute.xlu0 %1052
      %1054 = vrot.lane.b32.xlu0 %v884, 4
      %v1055 = vpop.permute.xlu0 %1054
      %1056 = vrot.lane.b32.xlu0 %v886, 4
      %v1057 = vpop.permute.xlu0 %1056
      %1090 = vrot.lane.b32.xlu0 %v890, 8
      %v1091 = vpop.permute.xlu0 %1090
      %1092 = vrot.lane.b32.xlu0 %v892, 8
      %v1093 = vpop.permute.xlu0 %1092
      %1094 = vrot.lane.b32.xlu0 %v895, 8
      %v1095 = vpop.permute.xlu0 %1094
      %1096 = vrot.lane.b32.xlu0 %v897, 8
      %v1097 = vpop.permute.xlu0 %1096
      %1098 = vrot.lane.b32.xlu0 %v900, 8
      %v1099 = vpop.permute.xlu0 %1098
      %1100 = vrot.lane.b32.xlu0 %v902, 8
      %v1101 = vpop.permute.xlu0 %1100
      %1102 = vrot.lane.b32.xlu0 %v905, 8
      %v1103 = vpop.permute.xlu0 %1102
      %1104 = vrot.lane.b32.xlu0 %v907, 8
      %v1105 = vpop.permute.xlu0 %1104
      %1106 = vrot.lane.b32.xlu0 %v910, 8
      %v1107 = vpop.permute.xlu0 %1106
      %1108 = vrot.lane.b32.xlu0 %v912, 8
      %v1109 = vpop.permute.xlu0 %1108
      %1110 = vrot.lane.b32.xlu0 %v915, 8
      %v1111 = vpop.permute.xlu0 %1110
      %1112 = vrot.lane.b32.xlu0 %v917, 8
      %v1113 = vpop.permute.xlu0 %1112
      %1114 = vrot.lane.b32.xlu0 %v920, 8
      %v1115 = vpop.permute.xlu0 %1114
      %1116 = vrot.lane.b32.xlu0 %v922, 8
      %v1117 = vpop.permute.xlu0 %1116
      %1118 = vrot.lane.b32.xlu0 %v925, 8
      %v1119 = vpop.permute.xlu0 %1118
      %1120 = vrot.lane.b32.xlu0 %v927, 8
      %v1121 = vpop.permute.xlu0 %1120
      %1122 = vrot.lane.b32.xlu0 %v930, 8
      %v1123 = vpop.permute.xlu0 %1122
      %1124 = vrot.lane.b32.xlu0 %v932, 8
      %v1125 = vpop.permute.xlu0 %1124
      %1126 = vrot.lane.b32.xlu0 %v935, 8
      %v1127 = vpop.permute.xlu0 %1126
      %1128 = vrot.lane.b32.xlu0 %v937, 8
      %v1129 = vpop.permute.xlu0 %1128
      %1130 = vrot.lane.b32.xlu0 %v940, 8
      %v1131 = vpop.permute.xlu0 %1130
      %1132 = vrot.lane.b32.xlu0 %v942, 8
      %v1133 = vpop.permute.xlu0 %1132
      %1134 = vrot.lane.b32.xlu0 %v945, 8
      %v1135 = vpop.permute.xlu0 %1134
      %1136 = vrot.lane.b32.xlu0 %v947, 8
      %v1137 = vpop.permute.xlu0 %1136
      %1138 = vrot.lane.b32.xlu0 %v950, 8
      %v1139 = vpop.permute.xlu0 %1138
      %1140 = vrot.lane.b32.xlu0 %v952, 8
      %v1141 = vpop.permute.xlu0 %1140
      %1142 = vrot.lane.b32.xlu0 %v955, 8
      %v1143 = vpop.permute.xlu0 %1142
      %1144 = vrot.lane.b32.xlu0 %v957, 8
      %v1145 = vpop.permute.xlu0 %1144
      %1146 = vrot.lane.b32.xlu0 %v960, 8
      %v1147 = vpop.permute.xlu0 %1146
      %1148 = vrot.lane.b32.xlu0 %v962, 8
      %v1149 = vpop.permute.xlu0 %1148
      %1150 = vrot.lane.b32.xlu0 %v965, 8
      %v1151 = vpop.permute.xlu0 %1150
      %1152 = vrot.lane.b32.xlu0 %v967, 8
      %v1153 = vpop.permute.xlu0 %1152
      %1186 = vrot.lane.b32.xlu0 %v707, 12
      %v1187 = vpop.permute.xlu0 %1186
      %1188 = vrot.lane.b32.xlu0 %v708, 12
      %v1189 = vpop.permute.xlu0 %1188
      %1190 = vrot.lane.b32.xlu0 %v710, 12
      %v1191 = vpop.permute.xlu0 %1190
      %1192 = vrot.lane.b32.xlu0 %v711, 12
      %v1193 = vpop.permute.xlu0 %1192
      %1194 = vrot.lane.b32.xlu0 %v713, 12
      %v1195 = vpop.permute.xlu0 %1194
      %1196 = vrot.lane.b32.xlu0 %v714, 12
      %v1197 = vpop.permute.xlu0 %1196
      %1198 = vrot.lane.b32.xlu0 %v716, 12
      %v1199 = vpop.permute.xlu0 %1198
      %1200 = vrot.lane.b32.xlu0 %v717, 12
      %v1201 = vpop.permute.xlu0 %1200
      %1202 = vrot.lane.b32.xlu0 %v719, 12
      %v1203 = vpop.permute.xlu0 %1202
      %1204 = vrot.lane.b32.xlu0 %v720, 12
      %v1205 = vpop.permute.xlu0 %1204
      %1206 = vrot.lane.b32.xlu0 %v722, 12
      %v1207 = vpop.permute.xlu0 %1206
      %1208 = vrot.lane.b32.xlu0 %v723, 12
      %v1209 = vpop.permute.xlu0 %1208
      %1210 = vrot.lane.b32.xlu0 %v725, 12
      %v1211 = vpop.permute.xlu0 %1210
      %1212 = vrot.lane.b32.xlu0 %v726, 12
      %v1213 = vpop.permute.xlu0 %1212
      %1214 = vrot.lane.b32.xlu0 %v728, 12
      %v1215 = vpop.permute.xlu0 %1214
      %1216 = vrot.lane.b32.xlu0 %v729, 12
      %v1217 = vpop.permute.xlu0 %1216
      %1218 = vrot.lane.b32.xlu0 %v731, 12
      %v1219 = vpop.permute.xlu0 %1218
      %1220 = vrot.lane.b32.xlu0 %v732, 12
      %v1221 = vpop.permute.xlu0 %1220
      %1222 = vrot.lane.b32.xlu0 %v734, 12
      %v1223 = vpop.permute.xlu0 %1222
      %1224 = vrot.lane.b32.xlu0 %v735, 12
      %v1225 = vpop.permute.xlu0 %1224
      %1226 = vrot.lane.b32.xlu0 %v737, 12
      %v1227 = vpop.permute.xlu0 %1226
      %1228 = vrot.lane.b32.xlu0 %v738, 12
      %v1229 = vpop.permute.xlu0 %1228
      %1230 = vrot.lane.b32.xlu0 %v740, 12
      %v1231 = vpop.permute.xlu0 %1230
      %1232 = vrot.lane.b32.xlu0 %v741, 12
      %v1233 = vpop.permute.xlu0 %1232
      %1234 = vrot.lane.b32.xlu0 %v743, 12
      %v1235 = vpop.permute.xlu0 %1234
      %1236 = vrot.lane.b32.xlu0 %v744, 12
      %v1237 = vpop.permute.xlu0 %1236
      %1238 = vrot.lane.b32.xlu0 %v746, 12
      %v1239 = vpop.permute.xlu0 %1238
      %1240 = vrot.lane.b32.xlu0 %v747, 12
      %v1241 = vpop.permute.xlu0 %1240
      %1242 = vrot.lane.b32.xlu0 %v749, 12
      %v1243 = vpop.permute.xlu0 %1242
      %1244 = vrot.lane.b32.xlu0 %v750, 12
      %v1245 = vpop.permute.xlu0 %1244
      %1246 = vrot.lane.b32.xlu0 %v752, 12
      %v1247 = vpop.permute.xlu0 %1246
      %1248 = vrot.lane.b32.xlu0 %v753, 12
      %v1249 = vpop.permute.xlu0 %1248
      %1282 = vrot.lane.b32.xlu0 %v814, 16
      %v1283 = vpop.permute.xlu0 %1282
      %1284 = vrot.lane.b32.xlu0 %v816, 16
      %v1285 = vpop.permute.xlu0 %1284
      %1286 = vrot.lane.b32.xlu0 %v819, 16
      %v1287 = vpop.permute.xlu0 %1286
      %1288 = vrot.lane.b32.xlu0 %v821, 16
      %v1289 = vpop.permute.xlu0 %1288
      %1290 = vrot.lane.b32.xlu0 %v824, 16
      %v1291 = vpop.permute.xlu0 %1290
      %1292 = vrot.lane.b32.xlu0 %v826, 16
      %v1293 = vpop.permute.xlu0 %1292
      %1294 = vrot.lane.b32.xlu0 %v829, 16
      %v1295 = vpop.permute.xlu0 %1294
      %1296 = vrot.lane.b32.xlu0 %v831, 16
      %v1297 = vpop.permute.xlu0 %1296
      %1298 = vrot.lane.b32.xlu0 %v834, 16
      %v1299 = vpop.permute.xlu0 %1298
      %1300 = vrot.lane.b32.xlu0 %v836, 16
      %v1301 = vpop.permute.xlu0 %1300
      %1302 = vrot.lane.b32.xlu0 %v839, 16
      %v1303 = vpop.permute.xlu0 %1302
      %1304 = vrot.lane.b32.xlu0 %v841, 16
      %v1305 = vpop.permute.xlu0 %1304
      %1306 = vrot.lane.b32.xlu0 %v844, 16
      %v1307 = vpop.permute.xlu0 %1306
      %1308 = vrot.lane.b32.xlu0 %v846, 16
      %v1309 = vpop.permute.xlu0 %1308
      %1310 = vrot.lane.b32.xlu0 %v849, 16
      %v1311 = vpop.permute.xlu0 %1310
      %1312 = vrot.lane.b32.xlu0 %v851, 16
      %v1313 = vpop.permute.xlu0 %1312
      %1314 = vrot.lane.b32.xlu0 %v854, 16
      %v1315 = vpop.permute.xlu0 %1314
      %1316 = vrot.lane.b32.xlu0 %v856, 16
      %v1317 = vpop.permute.xlu0 %1316
      %1318 = vrot.lane.b32.xlu0 %v859, 16
      %v1319 = vpop.permute.xlu0 %1318
      %1320 = vrot.lane.b32.xlu0 %v861, 16
      %v1321 = vpop.permute.xlu0 %1320
      %1322 = vrot.lane.b32.xlu0 %v864, 16
      %v1323 = vpop.permute.xlu0 %1322
      %1324 = vrot.lane.b32.xlu0 %v866, 16
      %v1325 = vpop.permute.xlu0 %1324
      %1326 = vrot.lane.b32.xlu0 %v869, 16
      %v1327 = vpop.permute.xlu0 %1326
      %1328 = vrot.lane.b32.xlu0 %v871, 16
      %v1329 = vpop.permute.xlu0 %1328
      %1330 = vrot.lane.b32.xlu0 %v874, 16
      %v1331 = vpop.permute.xlu0 %1330
      %1332 = vrot.lane.b32.xlu0 %v876, 16
      %v1333 = vpop.permute.xlu0 %1332
      %1334 = vrot.lane.b32.xlu0 %v879, 16
      %v1335 = vpop.permute.xlu0 %1334
      %1336 = vrot.lane.b32.xlu0 %v881, 16
      %v1337 = vpop.permute.xlu0 %1336
      %1338 = vrot.lane.b32.xlu0 %v884, 16
      %v1339 = vpop.permute.xlu0 %1338
      %1340 = vrot.lane.b32.xlu0 %v886, 16
      %v1341 = vpop.permute.xlu0 %1340
      %1342 = vrot.lane.b32.xlu0 %v973, 16
      %v1343 = vpop.permute.xlu0 %1342
      %1344 = vrot.lane.b32.xlu0 %v975, 16
      %v1345 = vpop.permute.xlu0 %1344
      %1378 = vrot.lane.b32.xlu0 %v895, 20
      %v1379 = vpop.permute.xlu0 %1378
      %1380 = vrot.lane.b32.xlu0 %v897, 20
      %v1381 = vpop.permute.xlu0 %1380
      %1382 = vrot.lane.b32.xlu0 %v900, 20
      %v1383 = vpop.permute.xlu0 %1382
      %1384 = vrot.lane.b32.xlu0 %v902, 20
      %v1385 = vpop.permute.xlu0 %1384
      %1386 = vrot.lane.b32.xlu0 %v905, 20
      %v1387 = vpop.permute.xlu0 %1386
      %1388 = vrot.lane.b32.xlu0 %v907, 20
      %v1389 = vpop.permute.xlu0 %1388
      %1390 = vrot.lane.b32.xlu0 %v910, 20
      %v1391 = vpop.permute.xlu0 %1390
      %1392 = vrot.lane.b32.xlu0 %v912, 20
      %v1393 = vpop.permute.xlu0 %1392
      %1394 = vrot.lane.b32.xlu0 %v915, 20
      %v1395 = vpop.permute.xlu0 %1394
      %1396 = vrot.lane.b32.xlu0 %v917, 20
      %v1397 = vpop.permute.xlu0 %1396
      %1398 = vrot.lane.b32.xlu0 %v920, 20
      %v1399 = vpop.permute.xlu0 %1398
      %1400 = vrot.lane.b32.xlu0 %v922, 20
      %v1401 = vpop.permute.xlu0 %1400
      %1402 = vrot.lane.b32.xlu0 %v925, 20
      %v1403 = vpop.permute.xlu0 %1402
      %1404 = vrot.lane.b32.xlu0 %v927, 20
      %v1405 = vpop.permute.xlu0 %1404
      %1406 = vrot.lane.b32.xlu0 %v930, 20
      %v1407 = vpop.permute.xlu0 %1406
      %1408 = vrot.lane.b32.xlu0 %v932, 20
      %v1409 = vpop.permute.xlu0 %1408
      %1410 = vrot.lane.b32.xlu0 %v935, 20
      %v1411 = vpop.permute.xlu0 %1410
      %1412 = vrot.lane.b32.xlu0 %v937, 20
      %v1413 = vpop.permute.xlu0 %1412
      %1414 = vrot.lane.b32.xlu0 %v940, 20
      %v1415 = vpop.permute.xlu0 %1414
      %1416 = vrot.lane.b32.xlu0 %v942, 20
      %v1417 = vpop.permute.xlu0 %1416
      %1418 = vrot.lane.b32.xlu0 %v945, 20
      %v1419 = vpop.permute.xlu0 %1418
      %1420 = vrot.lane.b32.xlu0 %v947, 20
      %v1421 = vpop.permute.xlu0 %1420
      %1422 = vrot.lane.b32.xlu0 %v950, 20
      %v1423 = vpop.permute.xlu0 %1422
      %1424 = vrot.lane.b32.xlu0 %v952, 20
      %v1425 = vpop.permute.xlu0 %1424
      %1426 = vrot.lane.b32.xlu0 %v955, 20
      %v1427 = vpop.permute.xlu0 %1426
      %1428 = vrot.lane.b32.xlu0 %v957, 20
      %v1429 = vpop.permute.xlu0 %1428
      %1430 = vrot.lane.b32.xlu0 %v960, 20
      %v1431 = vpop.permute.xlu0 %1430
      %1432 = vrot.lane.b32.xlu0 %v962, 20
      %v1433 = vpop.permute.xlu0 %1432
      %1434 = vrot.lane.b32.xlu0 %v965, 20
      %v1435 = vpop.permute.xlu0 %1434
      %1436 = vrot.lane.b32.xlu0 %v967, 20
      %v1437 = vpop.permute.xlu0 %1436
      %1438 = vrot.lane.b32.xlu0 %v978, 20
      %v1439 = vpop.permute.xlu0 %1438
      %1440 = vrot.lane.b32.xlu0 %v980, 20
      %v1441 = vpop.permute.xlu0 %1440
      %1474 = vrot.lane.b32.xlu0 %v710, 24
      %v1475 = vpop.permute.xlu0 %1474
      %1476 = vrot.lane.b32.xlu0 %v711, 24
      %v1477 = vpop.permute.xlu0 %1476
      %1478 = vrot.lane.b32.xlu0 %v713, 24
      %v1479 = vpop.permute.xlu0 %1478
      %1480 = vrot.lane.b32.xlu0 %v714, 24
      %v1481 = vpop.permute.xlu0 %1480
      %1482 = vrot.lane.b32.xlu0 %v716, 24
      %v1483 = vpop.permute.xlu0 %1482
      %1484 = vrot.lane.b32.xlu0 %v717, 24
      %v1485 = vpop.permute.xlu0 %1484
      %1486 = vrot.lane.b32.xlu0 %v719, 24
      %v1487 = vpop.permute.xlu0 %1486
      %1488 = vrot.lane.b32.xlu0 %v720, 24
      %v1489 = vpop.permute.xlu0 %1488
      %1490 = vrot.lane.b32.xlu0 %v722, 24
      %v1491 = vpop.permute.xlu0 %1490
      %1492 = vrot.lane.b32.xlu0 %v723, 24
      %v1493 = vpop.permute.xlu0 %1492
      %1494 = vrot.lane.b32.xlu0 %v725, 24
      %v1495 = vpop.permute.xlu0 %1494
      %1496 = vrot.lane.b32.xlu0 %v726, 24
      %v1497 = vpop.permute.xlu0 %1496
      %1498 = vrot.lane.b32.xlu0 %v728, 24
      %v1499 = vpop.permute.xlu0 %1498
      %1500 = vrot.lane.b32.xlu0 %v729, 24
      %v1501 = vpop.permute.xlu0 %1500
      %1502 = vrot.lane.b32.xlu0 %v731, 24
      %v1503 = vpop.permute.xlu0 %1502
      %1504 = vrot.lane.b32.xlu0 %v732, 24
      %v1505 = vpop.permute.xlu0 %1504
      %1506 = vrot.lane.b32.xlu0 %v734, 24
      %v1507 = vpop.permute.xlu0 %1506
      %1508 = vrot.lane.b32.xlu0 %v735, 24
      %v1509 = vpop.permute.xlu0 %1508
      %1510 = vrot.lane.b32.xlu0 %v737, 24
      %v1511 = vpop.permute.xlu0 %1510
      %1512 = vrot.lane.b32.xlu0 %v738, 24
      %v1513 = vpop.permute.xlu0 %1512
      %1514 = vrot.lane.b32.xlu0 %v740, 24
      %v1515 = vpop.permute.xlu0 %1514
      %1516 = vrot.lane.b32.xlu0 %v741, 24
      %v1517 = vpop.permute.xlu0 %1516
      %1518 = vrot.lane.b32.xlu0 %v743, 24
      %v1519 = vpop.permute.xlu0 %1518
      %1520 = vrot.lane.b32.xlu0 %v744, 24
      %v1521 = vpop.permute.xlu0 %1520
      %1522 = vrot.lane.b32.xlu0 %v746, 24
      %v1523 = vpop.permute.xlu0 %1522
      %1524 = vrot.lane.b32.xlu0 %v747, 24
      %v1525 = vpop.permute.xlu0 %1524
      %1526 = vrot.lane.b32.xlu0 %v749, 24
      %v1527 = vpop.permute.xlu0 %1526
      %1528 = vrot.lane.b32.xlu0 %v750, 24
      %v1529 = vpop.permute.xlu0 %1528
      %1530 = vrot.lane.b32.xlu0 %v752, 24
      %v1531 = vpop.permute.xlu0 %1530
      %1532 = vrot.lane.b32.xlu0 %v753, 24
      %v1533 = vpop.permute.xlu0 %1532
      %1534 = vrot.lane.b32.xlu0 %v755, 24
      %v1535 = vpop.permute.xlu0 %1534
      %1536 = vrot.lane.b32.xlu0 %v756, 24
      %v1537 = vpop.permute.xlu0 %1536
      %1570 = vrot.lane.b32.xlu0 %v819, 28
      %v1571 = vpop.permute.xlu0 %1570
      %1572 = vrot.lane.b32.xlu0 %v821, 28
      %v1573 = vpop.permute.xlu0 %1572
      %1574 = vrot.lane.b32.xlu0 %v824, 28
      %v1575 = vpop.permute.xlu0 %1574
      %1576 = vrot.lane.b32.xlu0 %v826, 28
      %v1577 = vpop.permute.xlu0 %1576
      %1578 = vrot.lane.b32.xlu0 %v829, 28
      %v1579 = vpop.permute.xlu0 %1578
      %1580 = vrot.lane.b32.xlu0 %v831, 28
      %v1581 = vpop.permute.xlu0 %1580
      %1582 = vrot.lane.b32.xlu0 %v834, 28
      %v1583 = vpop.permute.xlu0 %1582
      %1584 = vrot.lane.b32.xlu0 %v836, 28
      %v1585 = vpop.permute.xlu0 %1584
      %1586 = vrot.lane.b32.xlu0 %v839, 28
      %v1587 = vpop.permute.xlu0 %1586
      %1588 = vrot.lane.b32.xlu0 %v841, 28
      %v1589 = vpop.permute.xlu0 %1588
      %1590 = vrot.lane.b32.xlu0 %v844, 28
      %v1591 = vpop.permute.xlu0 %1590
      %1592 = vrot.lane.b32.xlu0 %v846, 28
      %v1593 = vpop.permute.xlu0 %1592
      %1594 = vrot.lane.b32.xlu0 %v849, 28
      %v1595 = vpop.permute.xlu0 %1594
      %1596 = vrot.lane.b32.xlu0 %v851, 28
      %v1597 = vpop.permute.xlu0 %1596
      %1598 = vrot.lane.b32.xlu0 %v854, 28
      %v1599 = vpop.permute.xlu0 %1598
      %1600 = vrot.lane.b32.xlu0 %v856, 28
      %v1601 = vpop.permute.xlu0 %1600
      %1602 = vrot.lane.b32.xlu0 %v859, 28
      %v1603 = vpop.permute.xlu0 %1602
      %1604 = vrot.lane.b32.xlu0 %v861, 28
      %v1605 = vpop.permute.xlu0 %1604
      %1606 = vrot.lane.b32.xlu0 %v864, 28
      %v1607 = vpop.permute.xlu0 %1606
      %1608 = vrot.lane.b32.xlu0 %v866, 28
      %v1609 = vpop.permute.xlu0 %1608
      %1610 = vrot.lane.b32.xlu0 %v869, 28
      %v1611 = vpop.permute.xlu0 %1610
      %1612 = vrot.lane.b32.xlu0 %v871, 28
      %v1613 = vpop.permute.xlu0 %1612
      %1614 = vrot.lane.b32.xlu0 %v874, 28
      %v1615 = vpop.permute.xlu0 %1614
      %1616 = vrot.lane.b32.xlu0 %v876, 28
      %v1617 = vpop.permute.xlu0 %1616
      %1618 = vrot.lane.b32.xlu0 %v879, 28
      %v1619 = vpop.permute.xlu0 %1618
      %1620 = vrot.lane.b32.xlu0 %v881, 28
      %v1621 = vpop.permute.xlu0 %1620
      %1622 = vrot.lane.b32.xlu0 %v884, 28
      %v1623 = vpop.permute.xlu0 %1622
      %1624 = vrot.lane.b32.xlu0 %v886, 28
      %v1625 = vpop.permute.xlu0 %1624
      %1626 = vrot.lane.b32.xlu0 %v973, 28
      %v1627 = vpop.permute.xlu0 %1626
      %1628 = vrot.lane.b32.xlu0 %v975, 28
      %v1629 = vpop.permute.xlu0 %1628
      %1630 = vrot.lane.b32.xlu0 %v986, 28
      %v1631 = vpop.permute.xlu0 %1630
      %1632 = vrot.lane.b32.xlu0 %v988, 28
      %v1633 = vpop.permute.xlu0 %1632
      %1666 = vrot.lane.b32.xlu0 %v900, 32
      %v1667 = vpop.permute.xlu0 %1666
      %1668 = vrot.lane.b32.xlu0 %v902, 32
      %v1669 = vpop.permute.xlu0 %1668
      %1670 = vrot.lane.b32.xlu0 %v905, 32
      %v1671 = vpop.permute.xlu0 %1670
      %1672 = vrot.lane.b32.xlu0 %v907, 32
      %v1673 = vpop.permute.xlu0 %1672
      %1674 = vrot.lane.b32.xlu0 %v910, 32
      %v1675 = vpop.permute.xlu0 %1674
      %1676 = vrot.lane.b32.xlu0 %v912, 32
      %v1677 = vpop.permute.xlu0 %1676
      %1678 = vrot.lane.b32.xlu0 %v915, 32
      %v1679 = vpop.permute.xlu0 %1678
      %1680 = vrot.lane.b32.xlu0 %v917, 32
      %v1681 = vpop.permute.xlu0 %1680
      %1682 = vrot.lane.b32.xlu0 %v920, 32
      %v1683 = vpop.permute.xlu0 %1682
      %1684 = vrot.lane.b32.xlu0 %v922, 32
      %v1685 = vpop.permute.xlu0 %1684
      %1686 = vrot.lane.b32.xlu0 %v925, 32
      %v1687 = vpop.permute.xlu0 %1686
      %1688 = vrot.lane.b32.xlu0 %v927, 32
      %v1689 = vpop.permute.xlu0 %1688
      %1690 = vrot.lane.b32.xlu0 %v930, 32
      %v1691 = vpop.permute.xlu0 %1690
      %1692 = vrot.lane.b32.xlu0 %v932, 32
      %v1693 = vpop.permute.xlu0 %1692
      %1694 = vrot.lane.b32.xlu0 %v935, 32
      %v1695 = vpop.permute.xlu0 %1694
      %1696 = vrot.lane.b32.xlu0 %v937, 32
      %v1697 = vpop.permute.xlu0 %1696
      %1698 = vrot.lane.b32.xlu0 %v940, 32
      %v1699 = vpop.permute.xlu0 %1698
      %1700 = vrot.lane.b32.xlu0 %v942, 32
      %v1701 = vpop.permute.xlu0 %1700
      %1702 = vrot.lane.b32.xlu0 %v945, 32
      %v1703 = vpop.permute.xlu0 %1702
      %1704 = vrot.lane.b32.xlu0 %v947, 32
      %v1705 = vpop.permute.xlu0 %1704
      %1706 = vrot.lane.b32.xlu0 %v950, 32
      %v1707 = vpop.permute.xlu0 %1706
      %1708 = vrot.lane.b32.xlu0 %v952, 32
      %v1709 = vpop.permute.xlu0 %1708
      %1710 = vrot.lane.b32.xlu0 %v955, 32
      %v1711 = vpop.permute.xlu0 %1710
      %1712 = vrot.lane.b32.xlu0 %v957, 32
      %v1713 = vpop.permute.xlu0 %1712
      %1714 = vrot.lane.b32.xlu0 %v960, 32
      %v1715 = vpop.permute.xlu0 %1714
      %1716 = vrot.lane.b32.xlu0 %v962, 32
      %v1717 = vpop.permute.xlu0 %1716
      %1718 = vrot.lane.b32.xlu0 %v965, 32
      %v1719 = vpop.permute.xlu0 %1718
      %1720 = vrot.lane.b32.xlu0 %v967, 32
      %v1721 = vpop.permute.xlu0 %1720
      %1722 = vrot.lane.b32.xlu0 %v978, 32
      %v1723 = vpop.permute.xlu0 %1722
      %1724 = vrot.lane.b32.xlu0 %v980, 32
      %v1725 = vpop.permute.xlu0 %1724
      %1726 = vrot.lane.b32.xlu0 %v991, 32
      %v1727 = vpop.permute.xlu0 %1726
      %1728 = vrot.lane.b32.xlu0 %v993, 32
      %v1729 = vpop.permute.xlu0 %1728
      %v1762 = vsel %vm370, %v704, %v995
      %v1763 = vsel %vm370, %v705, %v997
      %v1764 = vsel %vm370, %v707, %v999
      %v1765 = vsel %vm370, %v708, %v1001
      %v1766 = vsel %vm370, %v710, %v1003
      %v1767 = vsel %vm370, %v711, %v1005
      %v1768 = vsel %vm370, %v713, %v1007
      %v1769 = vsel %vm370, %v714, %v1009
      %v1770 = vsel %vm370, %v716, %v1011
      %v1771 = vsel %vm370, %v717, %v1013
      %v1772 = vsel %vm370, %v719, %v1015
      %v1773 = vsel %vm370, %v720, %v1017
      %v1774 = vsel %vm370, %v722, %v1019
      %v1775 = vsel %vm370, %v723, %v1021
      %v1776 = vsel %vm370, %v725, %v1023
      %v1777 = vsel %vm370, %v726, %v1025
      %v1778 = vsel %vm370, %v728, %v1027
      %v1779 = vsel %vm370, %v729, %v1029
      %v1780 = vsel %vm370, %v731, %v1031
      %v1781 = vsel %vm370, %v732, %v1033
      %v1782 = vsel %vm370, %v734, %v1035
      %v1783 = vsel %vm370, %v735, %v1037
      %v1784 = vsel %vm370, %v737, %v1039
      %v1785 = vsel %vm370, %v738, %v1041
      %v1786 = vsel %vm370, %v740, %v1043
      %v1787 = vsel %vm370, %v741, %v1045
      %v1788 = vsel %vm370, %v743, %v1047
      %v1789 = vsel %vm370, %v744, %v1049
      %v1790 = vsel %vm370, %v746, %v1051
      %v1791 = vsel %vm370, %v747, %v1053
      %v1792 = vsel %vm370, %v749, %v1055
      %v1793 = vsel %vm370, %v750, %v1057
      %vm1794 = vcmask 64512
      %v1795 = vsel %vm1794, %v1762, %v1091
      %v1796 = vsel %vm1794, %v1763, %v1093
      %v1797 = vsel %vm1794, %v1764, %v1095
      %v1798 = vsel %vm1794, %v1765, %v1097
      %v1799 = vsel %vm1794, %v1766, %v1099
      %v1800 = vsel %vm1794, %v1767, %v1101
      %v1801 = vsel %vm1794, %v1768, %v1103
      %v1802 = vsel %vm1794, %v1769, %v1105
      %v1803 = vsel %vm1794, %v1770, %v1107
      %v1804 = vsel %vm1794, %v1771, %v1109
      %v1805 = vsel %vm1794, %v1772, %v1111
      %v1806 = vsel %vm1794, %v1773, %v1113
      %v1807 = vsel %vm1794, %v1774, %v1115
      %v1808 = vsel %vm1794, %v1775, %v1117
      %v1809 = vsel %vm1794, %v1776, %v1119
      %v1810 = vsel %vm1794, %v1777, %v1121
      %v1811 = vsel %vm1794, %v1778, %v1123
      %v1812 = vsel %vm1794, %v1779, %v1125
      %v1813 = vsel %vm1794, %v1780, %v1127
      %v1814 = vsel %vm1794, %v1781, %v1129
      %v1815 = vsel %vm1794, %v1782, %v1131
      %v1816 = vsel %vm1794, %v1783, %v1133
      %v1817 = vsel %vm1794, %v1784, %v1135
      %v1818 = vsel %vm1794, %v1785, %v1137
      %v1819 = vsel %vm1794, %v1786, %v1139
      %v1820 = vsel %vm1794, %v1787, %v1141
      %v1821 = vsel %vm1794, %v1788, %v1143
      %v1822 = vsel %vm1794, %v1789, %v1145
      %v1823 = vsel %vm1794, %v1790, %v1147
      %v1824 = vsel %vm1794, %v1791, %v1149
      %v1825 = vsel %vm1794, %v1792, %v1151
      %v1826 = vsel %vm1794, %v1793, %v1153
      %vm1827 = vcmask 97280
      %v1828 = vsel %vm1827, %v1795, %v1187
      %v1829 = vsel %vm1827, %v1796, %v1189
      %v1830 = vsel %vm1827, %v1797, %v1191
      %v1831 = vsel %vm1827, %v1798, %v1193
      %v1832 = vsel %vm1827, %v1799, %v1195
      %v1833 = vsel %vm1827, %v1800, %v1197
      %v1834 = vsel %vm1827, %v1801, %v1199
      %v1835 = vsel %vm1827, %v1802, %v1201
      %v1836 = vsel %vm1827, %v1803, %v1203
      %v1837 = vsel %vm1827, %v1804, %v1205
      %v1838 = vsel %vm1827, %v1805, %v1207
      %v1839 = vsel %vm1827, %v1806, %v1209
      %v1840 = vsel %vm1827, %v1807, %v1211
      %v1841 = vsel %vm1827, %v1808, %v1213
      %v1842 = vsel %vm1827, %v1809, %v1215
      %v1843 = vsel %vm1827, %v1810, %v1217
      %v1844 = vsel %vm1827, %v1811, %v1219
      %v1845 = vsel %vm1827, %v1812, %v1221
      %v1846 = vsel %vm1827, %v1813, %v1223
      %v1847 = vsel %vm1827, %v1814, %v1225
      %v1848 = vsel %vm1827, %v1815, %v1227
      %v1849 = vsel %vm1827, %v1816, %v1229
      %v1850 = vsel %vm1827, %v1817, %v1231
      %v1851 = vsel %vm1827, %v1818, %v1233
      %v1852 = vsel %vm1827, %v1819, %v1235
      %v1853 = vsel %vm1827, %v1820, %v1237
      %v1854 = vsel %vm1827, %v1821, %v1239
      %v1855 = vsel %vm1827, %v1822, %v1241
      %v1856 = vsel %vm1827, %v1823, %v1243
      %v1857 = vsel %vm1827, %v1824, %v1245
      %v1858 = vsel %vm1827, %v1825, %v1247
      %v1859 = vsel %vm1827, %v1826, %v1249
      %vm1860 = vcmask 130048
      %v1861 = vsel %vm1860, %v1828, %v1283
      %v1862 = vsel %vm1860, %v1829, %v1285
      %v1863 = vsel %vm1860, %v1830, %v1287
      %v1864 = vsel %vm1860, %v1831, %v1289
      %v1865 = vsel %vm1860, %v1832, %v1291
      %v1866 = vsel %vm1860, %v1833, %v1293
      %v1867 = vsel %vm1860, %v1834, %v1295
      %v1868 = vsel %vm1860, %v1835, %v1297
      %v1869 = vsel %vm1860, %v1836, %v1299
      %v1870 = vsel %vm1860, %v1837, %v1301
      %v1871 = vsel %vm1860, %v1838, %v1303
      %v1872 = vsel %vm1860, %v1839, %v1305
      %v1873 = vsel %vm1860, %v1840, %v1307
      %v1874 = vsel %vm1860, %v1841, %v1309
      %v1875 = vsel %vm1860, %v1842, %v1311
      %v1876 = vsel %vm1860, %v1843, %v1313
      %v1877 = vsel %vm1860, %v1844, %v1315
      %v1878 = vsel %vm1860, %v1845, %v1317
      %v1879 = vsel %vm1860, %v1846, %v1319
      %v1880 = vsel %vm1860, %v1847, %v1321
      %v1881 = vsel %vm1860, %v1848, %v1323
      %v1882 = vsel %vm1860, %v1849, %v1325
      %v1883 = vsel %vm1860, %v1850, %v1327
      %v1884 = vsel %vm1860, %v1851, %v1329
      %v1885 = vsel %vm1860, %v1852, %v1331
      %v1886 = vsel %vm1860, %v1853, %v1333
      %v1887 = vsel %vm1860, %v1854, %v1335
      %v1888 = vsel %vm1860, %v1855, %v1337
      %v1889 = vsel %vm1860, %v1856, %v1339
      %v1890 = vsel %vm1860, %v1857, %v1341
      %v1891 = vsel %vm1860, %v1858, %v1343
      %v1892 = vsel %vm1860, %v1859, %v1345
      %vm1893 = vcmask 162816
      %v1894 = vsel %vm1893, %v1861, %v1379
      %v1895 = vsel %vm1893, %v1862, %v1381
      %v1896 = vsel %vm1893, %v1863, %v1383
      %v1897 = vsel %vm1893, %v1864, %v1385
      %v1898 = vsel %vm1893, %v1865, %v1387
      %v1899 = vsel %vm1893, %v1866, %v1389
      %v1900 = vsel %vm1893, %v1867, %v1391
      %v1901 = vsel %vm1893, %v1868, %v1393
      %v1902 = vsel %vm1893, %v1869, %v1395
      %v1903 = vsel %vm1893, %v1870, %v1397
      %v1904 = vsel %vm1893, %v1871, %v1399
      %v1905 = vsel %vm1893, %v1872, %v1401
      %v1906 = vsel %vm1893, %v1873, %v1403
      %v1907 = vsel %vm1893, %v1874, %v1405
      %v1908 = vsel %vm1893, %v1875, %v1407
      %v1909 = vsel %vm1893, %v1876, %v1409
      %v1910 = vsel %vm1893, %v1877, %v1411
      %v1911 = vsel %vm1893, %v1878, %v1413
      %v1912 = vsel %vm1893, %v1879, %v1415
      %v1913 = vsel %vm1893, %v1880, %v1417
      %v1914 = vsel %vm1893, %v1881, %v1419
      %v1915 = vsel %vm1893, %v1882, %v1421
      %v1916 = vsel %vm1893, %v1883, %v1423
      %v1917 = vsel %vm1893, %v1884, %v1425
      %v1918 = vsel %vm1893, %v1885, %v1427
      %v1919 = vsel %vm1893, %v1886, %v1429
      %v1920 = vsel %vm1893, %v1887, %v1431
      %v1921 = vsel %vm1893, %v1888, %v1433
      %v1922 = vsel %vm1893, %v1889, %v1435
      %v1923 = vsel %vm1893, %v1890, %v1437
      %v1924 = vsel %vm1893, %v1891, %v1439
      %v1925 = vsel %vm1893, %v1892, %v1441
      %vm1926 = vcmask 195584
      %v1927 = vsel %vm1926, %v1894, %v1475
      %v1928 = vsel %vm1926, %v1895, %v1477
      %v1929 = vsel %vm1926, %v1896, %v1479
      %v1930 = vsel %vm1926, %v1897, %v1481
      %v1931 = vsel %vm1926, %v1898, %v1483
      %v1932 = vsel %vm1926, %v1899, %v1485
      %v1933 = vsel %vm1926, %v1900, %v1487
      %v1934 = vsel %vm1926, %v1901, %v1489
      %v1935 = vsel %vm1926, %v1902, %v1491
      %v1936 = vsel %vm1926, %v1903, %v1493
      %v1937 = vsel %vm1926, %v1904, %v1495
      %v1938 = vsel %vm1926, %v1905, %v1497
      %v1939 = vsel %vm1926, %v1906, %v1499
      %v1940 = vsel %vm1926, %v1907, %v1501
      %v1941 = vsel %vm1926, %v1908, %v1503
      %v1942 = vsel %vm1926, %v1909, %v1505
      %v1943 = vsel %vm1926, %v1910, %v1507
      %v1944 = vsel %vm1926, %v1911, %v1509
      %v1945 = vsel %vm1926, %v1912, %v1511
      %v1946 = vsel %vm1926, %v1913, %v1513
      %v1947 = vsel %vm1926, %v1914, %v1515
      %v1948 = vsel %vm1926, %v1915, %v1517
      %v1949 = vsel %vm1926, %v1916, %v1519
      %v1950 = vsel %vm1926, %v1917, %v1521
      %v1951 = vsel %vm1926, %v1918, %v1523
      %v1952 = vsel %vm1926, %v1919, %v1525
      %v1953 = vsel %vm1926, %v1920, %v1527
      %v1954 = vsel %vm1926, %v1921, %v1529
      %v1955 = vsel %vm1926, %v1922, %v1531
      %v1956 = vsel %vm1926, %v1923, %v1533
      %v1957 = vsel %vm1926, %v1924, %v1535
      %v1958 = vsel %vm1926, %v1925, %v1537
      %vm1959 = vcmask 228352
      %v1960 = vsel %vm1959, %v1927, %v1571
      %v1961 = vsel %vm1959, %v1928, %v1573
      %v1962 = vsel %vm1959, %v1929, %v1575
      %v1963 = vsel %vm1959, %v1930, %v1577
      %v1964 = vsel %vm1959, %v1931, %v1579
      %v1965 = vsel %vm1959, %v1932, %v1581
      %v1966 = vsel %vm1959, %v1933, %v1583
      %v1967 = vsel %vm1959, %v1934, %v1585
      %v1968 = vsel %vm1959, %v1935, %v1587
      %v1969 = vsel %vm1959, %v1936, %v1589
      %v1970 = vsel %vm1959, %v1937, %v1591
      %v1971 = vsel %vm1959, %v1938, %v1593
      %v1972 = vsel %vm1959, %v1939, %v1595
      %v1973 = vsel %vm1959, %v1940, %v1597
      %v1974 = vsel %vm1959, %v1941, %v1599
      %v1975 = vsel %vm1959, %v1942, %v1601
      %v1976 = vsel %vm1959, %v1943, %v1603
      %v1977 = vsel %vm1959, %v1944, %v1605
      %v1978 = vsel %vm1959, %v1945, %v1607
      %v1979 = vsel %vm1959, %v1946, %v1609
      %v1980 = vsel %vm1959, %v1947, %v1611
      %v1981 = vsel %vm1959, %v1948, %v1613
      %v1982 = vsel %vm1959, %v1949, %v1615
      %v1983 = vsel %vm1959, %v1950, %v1617
      %v1984 = vsel %vm1959, %v1951, %v1619
      %v1985 = vsel %vm1959, %v1952, %v1621
      %v1986 = vsel %vm1959, %v1953, %v1623
      %v1987 = vsel %vm1959, %v1954, %v1625
      %v1988 = vsel %vm1959, %v1955, %v1627
      %v1989 = vsel %vm1959, %v1956, %v1629
      %v1990 = vsel %vm1959, %v1957, %v1631
      %v1991 = vsel %vm1959, %v1958, %v1633
      %vm1992 = vcmask 261120
      %v1993 = vsel %vm1992, %v1960, %v1667
      %v1994 = vsel %vm1992, %v1961, %v1669
      %v1995 = vsel %vm1992, %v1962, %v1671
      %v1996 = vsel %vm1992, %v1963, %v1673
      %v1997 = vsel %vm1992, %v1964, %v1675
      %v1998 = vsel %vm1992, %v1965, %v1677
      %v1999 = vsel %vm1992, %v1966, %v1679
      %v2000 = vsel %vm1992, %v1967, %v1681
      %v2001 = vsel %vm1992, %v1968, %v1683
      %v2002 = vsel %vm1992, %v1969, %v1685
      %v2003 = vsel %vm1992, %v1970, %v1687
      %v2004 = vsel %vm1992, %v1971, %v1689
      %v2005 = vsel %vm1992, %v1972, %v1691
      %v2006 = vsel %vm1992, %v1973, %v1693
      %v2007 = vsel %vm1992, %v1974, %v1695
      %v2008 = vsel %vm1992, %v1975, %v1697
      %v2009 = vsel %vm1992, %v1976, %v1699
      %v2010 = vsel %vm1992, %v1977, %v1701
      %v2011 = vsel %vm1992, %v1978, %v1703
      %v2012 = vsel %vm1992, %v1979, %v1705
      %v2013 = vsel %vm1992, %v1980, %v1707
      %v2014 = vsel %vm1992, %v1981, %v1709
      %v2015 = vsel %vm1992, %v1982, %v1711
      %v2016 = vsel %vm1992, %v1983, %v1713
      %v2017 = vsel %vm1992, %v1984, %v1715
      %v2018 = vsel %vm1992, %v1985, %v1717
      %v2019 = vsel %vm1992, %v1986, %v1719
      %v2020 = vsel %vm1992, %v1987, %v1721
      %v2021 = vsel %vm1992, %v1988, %v1723
      %v2022 = vsel %vm1992, %v1989, %v1725
      %v2023 = vsel %vm1992, %v1990, %v1727
      %v2024 = vsel %vm1992, %v1991, %v1729
      %v2025 = vld [vmem:[%s3] sm:$0xff]
      %v2026 = vld [vmem:[%s3 + $0x8] sm:$0xff]
      %v2027 = vld [vmem:[%s3 + $0x10] sm:$0xff]
      %v2028 = vld [vmem:[%s3 + $0x18] sm:$0xff]
      %v2029 = vld [vmem:[%s3 + $0x20] sm:$0xf]
      %v2030 = vld [vmem:[%s4] sm:$0x1]
      %v2032 = vperm.slane %v2030, 0
      %vm2034 = vcmask 293888
      %v2036 = vsel %vm2034, %v1993, 0
      %v2039 = vsel %vm2034, %v1994, 0
      %v2042 = vsel %vm2034, %v1995, 0
      %v2045 = vsel %vm2034, %v1996, 0
      %v2048 = vsel %vm2034, %v1997, 0
      %v2051 = vsel %vm2034, %v1998, 0
      %v2054 = vsel %vm2034, %v1999, 0
      %v2057 = vsel %vm2034, %v2000, 0
      %v2060 = vsel %vm2034, %v2001, 0
      %v2063 = vsel %vm2034, %v2002, 0
      %v2066 = vsel %vm2034, %v2003, 0
      %v2069 = vsel %vm2034, %v2004, 0
      %v2072 = vsel %vm2034, %v2005, 0
      %v2075 = vsel %vm2034, %v2006, 0
      %v2078 = vsel %vm2034, %v2007, 0
      %v2081 = vsel %vm2034, %v2008, 0
      %v2084 = vsel %vm2034, %v2009, 0
      %v2087 = vsel %vm2034, %v2010, 0
      %v2090 = vsel %vm2034, %v2011, 0
      %v2093 = vsel %vm2034, %v2012, 0
      %v2096 = vsel %vm2034, %v2013, 0
      %v2099 = vsel %vm2034, %v2014, 0
      %v2102 = vsel %vm2034, %v2015, 0
      %v2105 = vsel %vm2034, %v2016, 0
      %v2108 = vsel %vm2034, %v2017, 0
      %v2111 = vsel %vm2034, %v2018, 0
      %v2114 = vsel %vm2034, %v2019, 0
      %v2117 = vsel %vm2034, %v2020, 0
      %v2120 = vsel %vm2034, %v2021, 0
      %v2123 = vsel %vm2034, %v2022, 0
      %v2126 = vsel %vm2034, %v2023, 0
      %v2129 = vsel %vm2034, %v2024, 0
      %v2132 = vsel %vm467, %v2029, 0
      %2134 = vmatpush.msra.mxu0 0.0
      %2135 = vmatpush.msra.mxu0 0.0
      %2136 = vmatpush.msra.mxu0 0.0
      %2137 = vmatpush.msra.mxu0 0.0
      %2138 = vmatpush.msra.mxu0 0.0
      %2139 = vmatpush.msra.mxu0 0.0
      %2140 = vmatpush.msra.mxu0 0.0
      %2141 = vmatpush.msra.mxu0 0.0
      %2142 = vmatpush.msra.mxu0 0.0
      %2143 = vmatpush.msra.mxu0 0.0
      %2144 = vmatpush.msra.mxu0 0.0
      %2145 = vmatpush.msra.mxu0 %v2132
      %2146 = vmatpush.msra.mxu0 %v2028
      %2147 = vmatpush.msra.mxu0 %v2027
      %2148 = vmatpush.msra.mxu0 %v2026
      %2149 = vmatpush.msra.mxu0 %v2025
      %2150 = vmatmul.f32.gmra.mxu0 %v2036
      %v2151 = vpop.f32.mrf.mxu0
      %v2152 = vadd.f32 %v2032, %v2151
      %2153 = vmatmul.f32.gmra.mxu0 %v2039
      %v2154 = vpop.f32.mrf.mxu0
      %v2155 = vadd.f32 %v2032, %v2154
      %2156 = vmatmul.f32.gmra.mxu0 %v2042
      %v2157 = vpop.f32.mrf.mxu0
      %v2158 = vadd.f32 %v2032, %v2157
      %2159 = vmatmul.f32.gmra.mxu0 %v2045
      %v2160 = vpop.f32.mrf.mxu0
      %v2161 = vadd.f32 %v2032, %v2160
      %2162 = vmatmul.f32.gmra.mxu0 %v2048
      %v2163 = vpop.f32.mrf.mxu0
      %v2164 = vadd.f32 %v2032, %v2163
      %2165 = vmatmul.f32.gmra.mxu0 %v2051
      %v2166 = vpop.f32.mrf.mxu0
      %v2167 = vadd.f32 %v2032, %v2166
      %2168 = vmatmul.f32.gmra.mxu0 %v2054
      %v2169 = vpop.f32.mrf.mxu0
      %v2170 = vadd.f32 %v2032, %v2169
      %2171 = vmatmul.f32.gmra.mxu0 %v2057
      %v2172 = vpop.f32.mrf.mxu0
      %v2173 = vadd.f32 %v2032, %v2172
      %2174 = vmatmul.f32.gmra.mxu0 %v2060
      %v2175 = vpop.f32.mrf.mxu0
      %v2176 = vadd.f32 %v2032, %v2175
      %2177 = vmatmul.f32.gmra.mxu0 %v2063
      %v2178 = vpop.f32.mrf.mxu0
      %v2179 = vadd.f32 %v2032, %v2178
      %2180 = vmatmul.f32.gmra.mxu0 %v2066
      %v2181 = vpop.f32.mrf.mxu0
      %v2182 = vadd.f32 %v2032, %v2181
      %2183 = vmatmul.f32.gmra.mxu0 %v2069
      %v2184 = vpop.f32.mrf.mxu0
      %v2185 = vadd.f32 %v2032, %v2184
      %2186 = vmatmul.f32.gmra.mxu0 %v2072
      %v2187 = vpop.f32.mrf.mxu0
      %v2188 = vadd.f32 %v2032, %v2187
      %2189 = vmatmul.f32.gmra.mxu0 %v2075
      %v2190 = vpop.f32.mrf.mxu0
      %v2191 = vadd.f32 %v2032, %v2190
      %2192 = vmatmul.f32.gmra.mxu0 %v2078
      %v2193 = vpop.f32.mrf.mxu0
      %v2194 = vadd.f32 %v2032, %v2193
      %2195 = vmatmul.f32.gmra.mxu0 %v2081
      %v2196 = vpop.f32.mrf.mxu0
      %v2197 = vadd.f32 %v2032, %v2196
      %2198 = vmatmul.f32.gmra.mxu0 %v2084
      %v2199 = vpop.f32.mrf.mxu0
      %v2200 = vadd.f32 %v2032, %v2199
      %2201 = vmatmul.f32.gmra.mxu0 %v2087
      %v2202 = vpop.f32.mrf.mxu0
      %v2203 = vadd.f32 %v2032, %v2202
      %2204 = vmatmul.f32.gmra.mxu0 %v2090
      %v2205 = vpop.f32.mrf.mxu0
      %v2206 = vadd.f32 %v2032, %v2205
      %2207 = vmatmul.f32.gmra.mxu0 %v2093
      %v2208 = vpop.f32.mrf.mxu0
      %v2209 = vadd.f32 %v2032, %v2208
      %2210 = vmatmul.f32.gmra.mxu0 %v2096
      %v2211 = vpop.f32.mrf.mxu0
      %v2212 = vadd.f32 %v2032, %v2211
      %2213 = vmatmul.f32.gmra.mxu0 %v2099
      %v2214 = vpop.f32.mrf.mxu0
      %v2215 = vadd.f32 %v2032, %v2214
      %2216 = vmatmul.f32.gmra.mxu0 %v2102
      %v2217 = vpop.f32.mrf.mxu0
      %v2218 = vadd.f32 %v2032, %v2217
      %2219 = vmatmul.f32.gmra.mxu0 %v2105
      %v2220 = vpop.f32.mrf.mxu0
      %v2221 = vadd.f32 %v2032, %v2220
      %2222 = vmatmul.f32.gmra.mxu0 %v2108
      %v2223 = vpop.f32.mrf.mxu0
      %v2224 = vadd.f32 %v2032, %v2223
      %2225 = vmatmul.f32.gmra.mxu0 %v2111
      %v2226 = vpop.f32.mrf.mxu0
      %v2227 = vadd.f32 %v2032, %v2226
      %2228 = vmatmul.f32.gmra.mxu0 %v2114
      %v2229 = vpop.f32.mrf.mxu0
      %v2230 = vadd.f32 %v2032, %v2229
      %2231 = vmatmul.f32.gmra.mxu0 %v2117
      %v2232 = vpop.f32.mrf.mxu0
      %v2233 = vadd.f32 %v2032, %v2232
      %2234 = vmatmul.f32.gmra.mxu0 %v2120
      %v2235 = vpop.f32.mrf.mxu0
      %v2236 = vadd.f32 %v2032, %v2235
      %2237 = vmatmul.f32.gmra.mxu0 %v2123
      %v2238 = vpop.f32.mrf.mxu0
      %v2239 = vadd.f32 %v2032, %v2238
      %2240 = vmatmul.f32.gmra.mxu0 %v2126
      %v2241 = vpop.f32.mrf.mxu0
      %v2242 = vadd.f32 %v2032, %v2241
      %2243 = vmatmul.f32.gmra.mxu0 %v2129
      %v2244 = vpop.f32.mrf.mxu0
      %v2245 = vadd.f32 %v2032, %v2244
      %2246 = vdwg.mxu0
      %v2247 = vmax.f32 %v2152, 0.0
      %v2248 = vmax.f32 %v2155, 0.0
      %v2249 = vmax.f32 %v2158, 0.0
      %v2250 = vmax.f32 %v2161, 0.0
      %v2251 = vmax.f32 %v2164, 0.0
      %v2252 = vmax.f32 %v2167, 0.0
      %v2253 = vmax.f32 %v2170, 0.0
      %v2254 = vmax.f32 %v2173, 0.0
      %v2255 = vmax.f32 %v2176, 0.0
      %v2256 = vmax.f32 %v2179, 0.0
      %v2257 = vmax.f32 %v2182, 0.0
      %v2258 = vmax.f32 %v2185, 0.0
      %v2259 = vmax.f32 %v2188, 0.0
      %v2260 = vmax.f32 %v2191, 0.0
      %v2261 = vmax.f32 %v2194, 0.0
      %v2262 = vmax.f32 %v2197, 0.0
      %v2263 = vmax.f32 %v2200, 0.0
      %v2264 = vmax.f32 %v2203, 0.0
      %v2265 = vmax.f32 %v2206, 0.0
      %v2266 = vmax.f32 %v2209, 0.0
      %v2267 = vmax.f32 %v2212, 0.0
      %v2268 = vmax.f32 %v2215, 0.0
      %v2269 = vmax.f32 %v2218, 0.0
      %v2270 = vmax.f32 %v2221, 0.0
      %v2271 = vmax.f32 %v2224, 0.0
      %v2272 = vmax.f32 %v2227, 0.0
      %v2273 = vmax.f32 %v2230, 0.0
      %v2274 = vmax.f32 %v2233, 0.0
      %v2275 = vmax.f32 %v2236, 0.0
      %v2276 = vmax.f32 %v2239, 0.0
      %v2277 = vmax.f32 %v2242, 0.0
      %v2278 = vmax.f32 %v2245, 0.0
      %v2279 = vld [vmem:[%s5] sm:$0xf]
      %v2280 = vld [vmem:[%s6] sm:$0x1]
      %v2282 = vperm.slane %v2280, 0
      %v2285 = vsel %vm370, %v2247, 0
      %v2288 = vsel %vm370, %v2248, 0
      %v2291 = vsel %vm370, %v2249, 0
      %v2294 = vsel %vm370, %v2250, 0
      %v2297 = vsel %vm370, %v2251, 0
      %v2300 = vsel %vm370, %v2252, 0
      %v2303 = vsel %vm370, %v2253, 0
      %v2306 = vsel %vm370, %v2254, 0
      %v2309 = vsel %vm370, %v2255, 0
      %v2312 = vsel %vm370, %v2256, 0
      %v2315 = vsel %vm370, %v2257, 0
      %v2318 = vsel %vm370, %v2258, 0
      %v2321 = vsel %vm370, %v2259, 0
      %v2324 = vsel %vm370, %v2260, 0
      %v2327 = vsel %vm370, %v2261, 0
      %v2330 = vsel %vm370, %v2262, 0
      %v2333 = vsel %vm370, %v2263, 0
      %v2336 = vsel %vm370, %v2264, 0
      %v2339 = vsel %vm370, %v2265, 0
      %v2342 = vsel %vm370, %v2266, 0
      %v2345 = vsel %vm370, %v2267, 0
      %v2348 = vsel %vm370, %v2268, 0
      %v2351 = vsel %vm370, %v2269, 0
      %v2354 = vsel %vm370, %v2270, 0
      %v2357 = vsel %vm370, %v2271, 0
      %v2360 = vsel %vm370, %v2272, 0
      %v2363 = vsel %vm370, %v2273, 0
      %v2366 = vsel %vm370, %v2274, 0
      %v2369 = vsel %vm370, %v2275, 0
      %v2372 = vsel %vm370, %v2276, 0
      %v2375 = vsel %vm370, %v2277, 0
      %v2378 = vsel %vm370, %v2278, 0
      %v2381 = vsel %vm467, %v2279, 0
      %2383 = vmatpush.msra.mxu0 0.0
      %2384 = vmatpush.msra.mxu0 0.0
      %2385 = vmatpush.msra.mxu0 0.0
      %2386 = vmatpush.msra.mxu0 0.0
      %2387 = vmatpush.msra.mxu0 0.0
      %2388 = vmatpush.msra.mxu0 0.0
      %2389 = vmatpush.msra.mxu0 0.0
      %2390 = vmatpush.msra.mxu0 0.0
      %2391 = vmatpush.msra.mxu0 0.0
      %2392 = vmatpush.msra.mxu0 0.0
      %2393 = vmatpush.msra.mxu0 0.0
      %2394 = vmatpush.msra.mxu0 0.0
      %2395 = vmatpush.msra.mxu0 0.0
      %2396 = vmatpush.msra.mxu0 0.0
      %2397 = vmatpush.msra.mxu0 0.0
      %2398 = vmatpush.msra.mxu0 %v2381
      %2399 = vmatmul.f32.gmra.mxu0 %v2285
      %v2400 = vpop.f32.mrf.mxu0
      %v2401 = vadd.f32 %v2282, %v2400
      %2402 = vmatmul.f32.gmra.mxu0 %v2288
      %v2403 = vpop.f32.mrf.mxu0
      %v2404 = vadd.f32 %v2282, %v2403
      %2405 = vmatmul.f32.gmra.mxu0 %v2291
      %v2406 = vpop.f32.mrf.mxu0
      %v2407 = vadd.f32 %v2282, %v2406
      %2408 = vmatmul.f32.gmra.mxu0 %v2294
      %v2409 = vpop.f32.mrf.mxu0
      %v2410 = vadd.f32 %v2282, %v2409
      %2411 = vmatmul.f32.gmra.mxu0 %v2297
      %v2412 = vpop.f32.mrf.mxu0
      %v2413 = vadd.f32 %v2282, %v2412
      %2414 = vmatmul.f32.gmra.mxu0 %v2300
      %v2415 = vpop.f32.mrf.mxu0
      %v2416 = vadd.f32 %v2282, %v2415
      %2417 = vmatmul.f32.gmra.mxu0 %v2303
      %v2418 = vpop.f32.mrf.mxu0
      %v2419 = vadd.f32 %v2282, %v2418
      %2420 = vmatmul.f32.gmra.mxu0 %v2306
      %v2421 = vpop.f32.mrf.mxu0
      %v2422 = vadd.f32 %v2282, %v2421
      %2423 = vmatmul.f32.gmra.mxu0 %v2309
      %v2424 = vpop.f32.mrf.mxu0
      %v2425 = vadd.f32 %v2282, %v2424
      %2426 = vmatmul.f32.gmra.mxu0 %v2312
      %v2427 = vpop.f32.mrf.mxu0
      %v2428 = vadd.f32 %v2282, %v2427
      %2429 = vmatmul.f32.gmra.mxu0 %v2315
      %v2430 = vpop.f32.mrf.mxu0
      %v2431 = vadd.f32 %v2282, %v2430
      %2432 = vmatmul.f32.gmra.mxu0 %v2318
      %v2433 = vpop.f32.mrf.mxu0
      %v2434 = vadd.f32 %v2282, %v2433
      %2435 = vmatmul.f32.gmra.mxu0 %v2321
      %v2436 = vpop.f32.mrf.mxu0
      %v2437 = vadd.f32 %v2282, %v2436
      %2438 = vmatmul.f32.gmra.mxu0 %v2324
      %v2439 = vpop.f32.mrf.mxu0
      %v2440 = vadd.f32 %v2282, %v2439
      %2441 = vmatmul.f32.gmra.mxu0 %v2327
      %v2442 = vpop.f32.mrf.mxu0
      %v2443 = vadd.f32 %v2282, %v2442
      %2444 = vmatmul.f32.gmra.mxu0 %v2330
      %v2445 = vpop.f32.mrf.mxu0
      %v2446 = vadd.f32 %v2282, %v2445
      %2447 = vmatmul.f32.gmra.mxu0 %v2333
      %v2448 = vpop.f32.mrf.mxu0
      %v2449 = vadd.f32 %v2282, %v2448
      %2450 = vmatmul.f32.gmra.mxu0 %v2336
      %v2451 = vpop.f32.mrf.mxu0
      %v2452 = vadd.f32 %v2282, %v2451
      %2453 = vmatmul.f32.gmra.mxu0 %v2339
      %v2454 = vpop.f32.mrf.mxu0
      %v2455 = vadd.f32 %v2282, %v2454
      %2456 = vmatmul.f32.gmra.mxu0 %v2342
      %v2457 = vpop.f32.mrf.mxu0
      %v2458 = vadd.f32 %v2282, %v2457
      %2459 = vmatmul.f32.gmra.mxu0 %v2345
      %v2460 = vpop.f32.mrf.mxu0
      %v2461 = vadd.f32 %v2282, %v2460
      %2462 = vmatmul.f32.gmra.mxu0 %v2348
      %v2463 = vpop.f32.mrf.mxu0
      %v2464 = vadd.f32 %v2282, %v2463
      %2465 = vmatmul.f32.gmra.mxu0 %v2351
      %v2466 = vpop.f32.mrf.mxu0
      %v2467 = vadd.f32 %v2282, %v2466
      %2468 = vmatmul.f32.gmra.mxu0 %v2354
      %v2469 = vpop.f32.mrf.mxu0
      %v2470 = vadd.f32 %v2282, %v2469
      %2471 = vmatmul.f32.gmra.mxu0 %v2357
      %v2472 = vpop.f32.mrf.mxu0
      %v2473 = vadd.f32 %v2282, %v2472
      %2474 = vmatmul.f32.gmra.mxu0 %v2360
      %v2475 = vpop.f32.mrf.mxu0
      %v2476 = vadd.f32 %v2282, %v2475
      %2477 = vmatmul.f32.gmra.mxu0 %v2363
      %v2478 = vpop.f32.mrf.mxu0
      %v2479 = vadd.f32 %v2282, %v2478
      %2480 = vmatmul.f32.gmra.mxu0 %v2366
      %v2481 = vpop.f32.mrf.mxu0
      %v2482 = vadd.f32 %v2282, %v2481
      %2483 = vmatmul.f32.gmra.mxu0 %v2369
      %v2484 = vpop.f32.mrf.mxu0
      %v2485 = vadd.f32 %v2282, %v2484
      %2486 = vmatmul.f32.gmra.mxu0 %v2372
      %v2487 = vpop.f32.mrf.mxu0
      %v2488 = vadd.f32 %v2282, %v2487
      %2489 = vmatmul.f32.gmra.mxu0 %v2375
      %v2490 = vpop.f32.mrf.mxu0
      %v2491 = vadd.f32 %v2282, %v2490
      %2492 = vmatmul.f32.gmra.mxu0 %v2378
      %v2493 = vpop.f32.mrf.mxu0
      %v2494 = vadd.f32 %v2282, %v2493
      %2495 = vdwg.mxu0
      %v2496 = vld [vmem:[%s7] sm:$0xf]
      %v2497 = vld [vmem:[%s8] sm:$0x1]
      %v2499 = vperm.slane %v2497, 0
      %v2502 = vsel %vm467, %v2496, 0
      %2504 = vmatpush.msra.mxu0 0.0
      %2505 = vmatpush.msra.mxu0 0.0
      %2506 = vmatpush.msra.mxu0 0.0
      %2507 = vmatpush.msra.mxu0 0.0
      %2508 = vmatpush.msra.mxu0 0.0
      %2509 = vmatpush.msra.mxu0 0.0
      %2510 = vmatpush.msra.mxu0 0.0
      %2511 = vmatpush.msra.mxu0 0.0
      %2512 = vmatpush.msra.mxu0 0.0
      %2513 = vmatpush.msra.mxu0 0.0
      %2514 = vmatpush.msra.mxu0 0.0
      %2515 = vmatpush.msra.mxu0 0.0
      %2516 = vmatpush.msra.mxu0 0.0
      %2517 = vmatpush.msra.mxu0 0.0
      %2518 = vmatpush.msra.mxu0 0.0
      %2519 = vmatpush.msra.mxu0 %v2502
      %2520 = vmatmul.f32.gmra.mxu0 %v372
      %v2521 = vpop.f32.mrf.mxu0
      %v2522 = vadd.f32 %v2499, %v2521
      %2523 = vmatmul.f32.gmra.mxu0 %v375
      %v2524 = vpop.f32.mrf.mxu0
      %v2525 = vadd.f32 %v2499, %v2524
      %2526 = vmatmul.f32.gmra.mxu0 %v378
      %v2527 = vpop.f32.mrf.mxu0
      %v2528 = vadd.f32 %v2499, %v2527
      %2529 = vmatmul.f32.gmra.mxu0 %v381
      %v2530 = vpop.f32.mrf.mxu0
      %v2531 = vadd.f32 %v2499, %v2530
      %2532 = vmatmul.f32.gmra.mxu0 %v384
      %v2533 = vpop.f32.mrf.mxu0
      %v2534 = vadd.f32 %v2499, %v2533
      %2535 = vmatmul.f32.gmra.mxu0 %v387
      %v2536 = vpop.f32.mrf.mxu0
      %v2537 = vadd.f32 %v2499, %v2536
      %2538 = vmatmul.f32.gmra.mxu0 %v390
      %v2539 = vpop.f32.mrf.mxu0
      %v2540 = vadd.f32 %v2499, %v2539
      %2541 = vmatmul.f32.gmra.mxu0 %v393
      %v2542 = vpop.f32.mrf.mxu0
      %v2543 = vadd.f32 %v2499, %v2542
      %2544 = vmatmul.f32.gmra.mxu0 %v396
      %v2545 = vpop.f32.mrf.mxu0
      %v2546 = vadd.f32 %v2499, %v2545
      %2547 = vmatmul.f32.gmra.mxu0 %v399
      %v2548 = vpop.f32.mrf.mxu0
      %v2549 = vadd.f32 %v2499, %v2548
      %2550 = vmatmul.f32.gmra.mxu0 %v402
      %v2551 = vpop.f32.mrf.mxu0
      %v2552 = vadd.f32 %v2499, %v2551
      %2553 = vmatmul.f32.gmra.mxu0 %v405
      %v2554 = vpop.f32.mrf.mxu0
      %v2555 = vadd.f32 %v2499, %v2554
      %2556 = vmatmul.f32.gmra.mxu0 %v408
      %v2557 = vpop.f32.mrf.mxu0
      %v2558 = vadd.f32 %v2499, %v2557
      %2559 = vmatmul.f32.gmra.mxu0 %v411
      %v2560 = vpop.f32.mrf.mxu0
      %v2561 = vadd.f32 %v2499, %v2560
      %2562 = vmatmul.f32.gmra.mxu0 %v414
      %v2563 = vpop.f32.mrf.mxu0
      %v2564 = vadd.f32 %v2499, %v2563
      %2565 = vmatmul.f32.gmra.mxu0 %v417
      %v2566 = vpop.f32.mrf.mxu0
      %v2567 = vadd.f32 %v2499, %v2566
      %2568 = vmatmul.f32.gmra.mxu0 %v420
      %v2569 = vpop.f32.mrf.mxu0
      %v2570 = vadd.f32 %v2499, %v2569
      %2571 = vmatmul.f32.gmra.mxu0 %v423
      %v2572 = vpop.f32.mrf.mxu0
      %v2573 = vadd.f32 %v2499, %v2572
      %2574 = vmatmul.f32.gmra.mxu0 %v426
      %v2575 = vpop.f32.mrf.mxu0
      %v2576 = vadd.f32 %v2499, %v2575
      %2577 = vmatmul.f32.gmra.mxu0 %v429
      %v2578 = vpop.f32.mrf.mxu0
      %v2579 = vadd.f32 %v2499, %v2578
      %2580 = vmatmul.f32.gmra.mxu0 %v432
      %v2581 = vpop.f32.mrf.mxu0
      %v2582 = vadd.f32 %v2499, %v2581
      %2583 = vmatmul.f32.gmra.mxu0 %v435
      %v2584 = vpop.f32.mrf.mxu0
      %v2585 = vadd.f32 %v2499, %v2584
      %2586 = vmatmul.f32.gmra.mxu0 %v438
      %v2587 = vpop.f32.mrf.mxu0
      %v2588 = vadd.f32 %v2499, %v2587
      %2589 = vmatmul.f32.gmra.mxu0 %v441
      %v2590 = vpop.f32.mrf.mxu0
      %v2591 = vadd.f32 %v2499, %v2590
      %2592 = vmatmul.f32.gmra.mxu0 %v444
      %v2593 = vpop.f32.mrf.mxu0
      %v2594 = vadd.f32 %v2499, %v2593
      %2595 = vmatmul.f32.gmra.mxu0 %v447
      %v2596 = vpop.f32.mrf.mxu0
      %v2597 = vadd.f32 %v2499, %v2596
      %2598 = vmatmul.f32.gmra.mxu0 %v450
      %v2599 = vpop.f32.mrf.mxu0
      %v2600 = vadd.f32 %v2499, %v2599
      %2601 = vmatmul.f32.gmra.mxu0 %v453
      %v2602 = vpop.f32.mrf.mxu0
      %v2603 = vadd.f32 %v2499, %v2602
      %2604 = vmatmul.f32.gmra.mxu0 %v456
      %v2605 = vpop.f32.mrf.mxu0
      %v2606 = vadd.f32 %v2499, %v2605
      %2607 = vmatmul.f32.gmra.mxu0 %v459
      %v2608 = vpop.f32.mrf.mxu0
      %v2609 = vadd.f32 %v2499, %v2608
      %2610 = vmatmul.f32.gmra.mxu0 %v462
      %v2611 = vpop.f32.mrf.mxu0
      %v2612 = vadd.f32 %v2499, %v2611
      %2613 = vmatmul.f32.gmra.mxu0 %v465
      %v2614 = vpop.f32.mrf.mxu0
      %v2615 = vadd.f32 %v2499, %v2614
      %2616 = vdwg.mxu0
      %v2617 = vadd.f32 %v2401, %v2522
      %v2618 = vadd.f32 %v2404, %v2525
      %v2619 = vadd.f32 %v2407, %v2528
      %v2620 = vadd.f32 %v2410, %v2531
      %v2621 = vadd.f32 %v2413, %v2534
      %v2622 = vadd.f32 %v2416, %v2537
      %v2623 = vadd.f32 %v2419, %v2540
      %v2624 = vadd.f32 %v2422, %v2543
      %v2625 = vadd.f32 %v2425, %v2546
      %v2626 = vadd.f32 %v2428, %v2549
      %v2627 = vadd.f32 %v2431, %v2552
      %v2628 = vadd.f32 %v2434, %v2555
      %v2629 = vadd.f32 %v2437, %v2558
      %v2630 = vadd.f32 %v2440, %v2561
      %v2631 = vadd.f32 %v2443, %v2564
      %v2632 = vadd.f32 %v2446, %v2567
      %v2633 = vadd.f32 %v2449, %v2570
      %v2634 = vadd.f32 %v2452, %v2573
      %v2635 = vadd.f32 %v2455, %v2576
      %v2636 = vadd.f32 %v2458, %v2579
      %v2637 = vadd.f32 %v2461, %v2582
      %v2638 = vadd.f32 %v2464, %v2585
      %v2639 = vadd.f32 %v2467, %v2588
      %v2640 = vadd.f32 %v2470, %v2591
      %v2641 = vadd.f32 %v2473, %v2594
      %v2642 = vadd.f32 %v2476, %v2597
      %v2643 = vadd.f32 %v2479, %v2600
      %v2644 = vadd.f32 %v2482, %v2603
      %v2645 = vadd.f32 %v2485, %v2606
      %v2646 = vadd.f32 %v2488, %v2609
      %v2647 = vadd.f32 %v2491, %v2612
      %v2648 = vadd.f32 %v2494, %v2615
      %v2649 = vmax.f32 %v2617, 0.0
      %v2650 = vmax.f32 %v2618, 0.0
      %v2651 = vmax.f32 %v2619, 0.0
      %v2652 = vmax.f32 %v2620, 0.0
      %v2653 = vmax.f32 %v2621, 0.0
      %v2654 = vmax.f32 %v2622, 0.0
      %v2655 = vmax.f32 %v2623, 0.0
      %v2656 = vmax.f32 %v2624, 0.0
      %v2657 = vmax.f32 %v2625, 0.0
      %v2658 = vmax.f32 %v2626, 0.0
      %v2659 = vmax.f32 %v2627, 0.0
      %v2660 = vmax.f32 %v2628, 0.0
      %v2661 = vmax.f32 %v2629, 0.0
      %v2662 = vmax.f32 %v2630, 0.0
      %v2663 = vmax.f32 %v2631, 0.0
      %v2664 = vmax.f32 %v2632, 0.0
      %v2665 = vmax.f32 %v2633, 0.0
      %v2666 = vmax.f32 %v2634, 0.0
      %v2667 = vmax.f32 %v2635, 0.0
      %v2668 = vmax.f32 %v2636, 0.0
      %v2669 = vmax.f32 %v2637, 0.0
      %v2670 = vmax.f32 %v2638, 0.0
      %v2671 = vmax.f32 %v2639, 0.0
      %v2672 = vmax.f32 %v2640, 0.0
      %v2673 = vmax.f32 %v2641, 0.0
      %v2674 = vmax.f32 %v2642, 0.0
      %v2675 = vmax.f32 %v2643, 0.0
      %v2676 = vmax.f32 %v2644, 0.0
      %v2677 = vmax.f32 %v2645, 0.0
      %v2678 = vmax.f32 %v2646, 0.0
      %v2679 = vmax.f32 %v2647, 0.0
      %v2680 = vmax.f32 %v2648, 0.0
      %2681 = vst.msk [vmem:[%s332] sm:$0xff] %vm1860, %v2649
      %2682 = vst.msk [vmem:[%s332 + $0x8] sm:$0xff] %vm1860, %v2650
      %2683 = vst.msk [vmem:[%s332 + $0x10] sm:$0xff] %vm1860, %v2651
      %2684 = vst.msk [vmem:[%s332 + $0x18] sm:$0xff] %vm1860, %v2652
      %2685 = vst.msk [vmem:[%s332 + $0x20] sm:$0xff] %vm1860, %v2653
      %2686 = vst.msk [vmem:[%s332 + $0x28] sm:$0xff] %vm1860, %v2654
      %2687 = vst.msk [vmem:[%s332 + $0x30] sm:$0xff] %vm1860, %v2655
      %2688 = vst.msk [vmem:[%s332 + $0x38] sm:$0xff] %vm1860, %v2656
      %2689 = vst.msk [vmem:[%s332 + $0x40] sm:$0xff] %vm1860, %v2657
      %2690 = vst.msk [vmem:[%s332 + $0x48] sm:$0xff] %vm1860, %v2658
      %2691 = vst.msk [vmem:[%s332 + $0x50] sm:$0xff] %vm1860, %v2659
      %2692 = vst.msk [vmem:[%s332 + $0x58] sm:$0xff] %vm1860, %v2660
      %2693 = vst.msk [vmem:[%s332 + $0x60] sm:$0xff] %vm1860, %v2661
      %2694 = vst.msk [vmem:[%s332 + $0x68] sm:$0xff] %vm1860, %v2662
      %2695 = vst.msk [vmem:[%s332 + $0x70] sm:$0xff] %vm1860, %v2663
      %2696 = vst.msk [vmem:[%s332 + $0x78] sm:$0xff] %vm1860, %v2664
      %2697 = vst.msk [vmem:[%s332 + $0x80] sm:$0xff] %vm1860, %v2665
      %2698 = vst.msk [vmem:[%s332 + $0x88] sm:$0xff] %vm1860, %v2666
      %2699 = vst.msk [vmem:[%s332 + $0x90] sm:$0xff] %vm1860, %v2667
      %2700 = vst.msk [vmem:[%s332 + $0x98] sm:$0xff] %vm1860, %v2668
      %2701 = vst.msk [vmem:[%s332 + $0xa0] sm:$0xff] %vm1860, %v2669
      %2702 = vst.msk [vmem:[%s332 + $0xa8] sm:$0xff] %vm1860, %v2670
      %2703 = vst.msk [vmem:[%s332 + $0xb0] sm:$0xff] %vm1860, %v2671
      %2704 = vst.msk [vmem:[%s332 + $0xb8] sm:$0xff] %vm1860, %v2672
      %2705 = vst.msk [vmem:[%s332 + $0xc0] sm:$0xff] %vm1860, %v2673
      %2706 = vst.msk [vmem:[%s332 + $0xc8] sm:$0xff] %vm1860, %v2674
      %2707 = vst.msk [vmem:[%s332 + $0xd0] sm:$0xff] %vm1860, %v2675
      %2708 = vst.msk [vmem:[%s332 + $0xd8] sm:$0xff] %vm1860, %v2676
      %2709 = vst.msk [vmem:[%s332 + $0xe0] sm:$0xff] %vm1860, %v2677
      %2710 = vst.msk [vmem:[%s332 + $0xe8] sm:$0xff] %vm1860, %v2678
      %2711 = vst.msk [vmem:[%s332 + $0xf0] sm:$0xff] %vm1860, %v2679
      %2712 = vst.msk [vmem:[%s332 + $0xf8] sm:$0xff] %vm1860, %v2680
      %p2713 = scmp.lt.s32.totalorder %s20, 1
      %s2714 = scalar_select %p2713, %s20, 1
      %s2715 = smul.addr %s2714, 32
      %s2716 = smul.addr %s2715, 8
      %s2717 = scalar_lea.vmem %s9, %s2716
      // Predicated region
      $region57: #{tpu_custom_call.1} parent=55 // pred_check
        %p2718 = pneg %p232
      $region58: #{tpu_custom_call.1} parent=55 // pred_check_branch
        %2720 = sbr.rel (%p2718) target = $region60
      $region59: #{tpu_custom_call.1} parent=55 // pred_region
        _
      $region60: #{tpu_custom_call.1} parent=55 // pred_fallthru
        _
    $region56: #{tpu_custom_call.1} parent=5 // pred_fallthru
      _
    %p2721 = scmp.le.s32.totalorder 2, %s15
    // Predicated region
    $region61: #{tpu_custom_call.1} parent=5 // pred_check
      %p2722 = pneg %p2721
    $region62: #{tpu_custom_call.1} parent=5 // pred_check_branch
      %2724 = sbr.rel (%p2722) target = $region64
    $region63: #{tpu_custom_call.1} parent=5 // pred_region
      %s2725 = ssub.s32 %s15, 2
      // Predicated region
      $region65: #{tpu_custom_call.1} parent=63 // pred_check
        %p2726 = pneg %p238
      $region66: #{tpu_custom_call.1} parent=63 // pred_check_branch
        %2728 = sbr.rel (%p2726) target = $region68
      $region67: #{tpu_custom_call.1} parent=63 // pred_region
        %p2729 = scmp.lt.s32.totalorder %s21, 1
        %s2730 = scalar_select %p2729, %s21, 1
        %s2731 = smul.addr %s2730, 32
        %s2732 = smul.addr %s2731, 8
        %s2733 = scalar_lea.vmem %s9, %s2732
      $region68: #{tpu_custom_call.1} parent=63 // pred_fallthru
        _
    $region64: #{tpu_custom_call.1} parent=5 // pred_fallthru
      _
  $region6: #{tpu_custom_call.1} parent=0 // loop_footer
    %s19 = sadd.s32 1, %s15
  $region7: #{tpu_custom_call.1} parent=0 // loop_footer_branch
    %14 = sbr.rel target = $region3
  $region8: #{tpu_custom_call.1} parent=0 // loop_exit
    _

</llo_original>
